<compile_context>
chip_gen: v5e
topology: v5e:2x2
jax: 0.10.0
libtpu: 0.0.40
codegen_flags: <defaults>
</compile_context>

<pallas_src>
import math

import jax
import jax.numpy as jnp
from jax.experimental import pallas as pl
from jax.experimental.pallas import tpu as pltpu


# ----------------------------- helpers --------------------------------------


def _round_up(n, m):
    return ((n + m - 1) // m) * m


def _layernorm(h, w, b, eps=1e-5):
    mu = jnp.mean(h, axis=-1, keepdims=True)
    xc = h - mu
    var = jnp.mean(xc * xc, axis=-1, keepdims=True)
    return xc * jax.lax.rsqrt(var + eps) * w + b


def _erf(x):
    # Abramowitz & Stegun 7.1.26, |error| <= 1.5e-7 — fp32-exact for practical
    # purposes; used instead of lax.erf so the kernel only needs exp/div.
    p = 0.3275911
    a1, a2, a3, a4, a5 = (0.254829592, -0.284496736, 1.421413741,
                          -1.453152027, 1.061405429)
    sgn = jnp.where(x >= 0.0, 1.0, -1.0)
    ax = x * sgn
    t = 1.0 / (1.0 + p * ax)
    poly = ((((a5 * t + a4) * t + a3) * t + a2) * t + a1) * t
    return sgn * (1.0 - poly * jnp.exp(-ax * ax))


def _gelu_exact(x):
    return 0.5 * x * (1.0 + _erf(x * 0.7071067811865476))


# ----------------------------- kernel ---------------------------------------


def _make_fused_kernel(B, T, D, L, n_labels, pooling):
    """Build the fused forward kernel for static (B, T, D, L, pooling)."""
    Tt = T + 1 if pooling == "cls" else T      # logical tokens per sequence
    Tp = _round_up(Tt, 8)                      # sublane-aligned block height
    BT = B * Tp
    scale = 1.0 / math.sqrt(D)
    NEG = -1e30

    def kernel(x_ref, binary_ref, cls_ref,
               ln1w_ref, ln1b_ref,
               wq_ref, bq_ref, wk_ref, bk_ref, wv_ref, bv_ref, wd_ref, bd_ref,
               ln2w_ref, ln2b_ref,
               wfc_ref, bfc_ref, wproj_ref, bproj_ref,
               wcx_ref, wcb_ref, bcls_ref,
               o_ref, xbuf_ref):
        # --- assemble the flat (B*Tp, D) activation slab (8-aligned stores) --
        if Tp != Tt:
            xbuf_ref[...] = jnp.zeros((BT, D), jnp.float32)   # zero pad rows
        for b in range(B):
            base = b * Tp
            xbuf_ref[base:base + T, :] = x_ref[b]             # base % 8 == 0
            if pooling == "cls":
                # No positional encoding -> permutation-equivariant; CLS token
                # lives at slot T (still 8-aligned when T % 8 == 0).
                xbuf_ref[base + T:base + T + 1, :] = cls_ref[0]
        x = xbuf_ref[...]                                     # (BT, D)

        # --- block-diagonal mask: attend only to valid keys of own sequence --
        row_i = jax.lax.broadcasted_iota(jnp.int32, (BT, BT), 0)
        col_i = jax.lax.broadcasted_iota(jnp.int32, (BT, BT), 1)
        mask = jnp.zeros((BT, BT), dtype=jnp.bool_)
        for b in range(B):
            lo = b * Tp
            in_row = (row_i >= lo) & (row_i < lo + Tp)
            in_col = (col_i >= lo) & (col_i < lo + Tt)        # drop pad keys
            mask = mask | (in_row & in_col)

        # --- transformer blocks (unrolled, activations stay in VMEM/vregs) ---
        for l in range(L):
            # attention branch: x = x + Dense(softmax(QK^T / sqrt(D)) V)
            h = _layernorm(x, ln1w_ref[l], ln1b_ref[l])
            q = jnp.dot(h, wq_ref[l], preferred_element_type=jnp.float32) + bq_ref[l]
            k = jnp.dot(h, wk_ref[l], preferred_element_type=jnp.float32) + bk_ref[l]
            v = jnp.dot(h, wv_ref[l], preferred_element_type=jnp.float32) + bv_ref[l]

            s = jax.lax.dot_general(q, k, (((1,), (1,)), ((), ())),
                                    preferred_element_type=jnp.float32) * scale
            s = jnp.where(mask, s, NEG)
            s = s - jnp.max(s, axis=-1, keepdims=True)
            e = jnp.exp(s)
            attn = e * pl.reciprocal(jnp.sum(e, axis=-1, keepdims=True),
                                     approx=True)

            y = jnp.dot(attn, v, preferred_element_type=jnp.float32)
            x = x + jnp.dot(y, wd_ref[l], preferred_element_type=jnp.float32) + bd_ref[l]

            # MLP branch: x = x + Proj(GELU(FC(LN2(x))))
            h2 = _layernorm(x, ln2w_ref[l], ln2b_ref[l])
            m = jnp.dot(h2, wfc_ref[l], preferred_element_type=jnp.float32) + bfc_ref[l]
            m = _gelu_exact(m)                                # exact-erf GELU
            x = x + jnp.dot(m, wproj_ref[l], preferred_element_type=jnp.float32) + bproj_ref[l]

        # --- pooling (vectorized over the batch) ------------------------------
        if pooling == "max":
            x3 = x.reshape(B, Tp, D)
            if Tp != Tt:
                rid = jax.lax.broadcasted_iota(jnp.int32, (B, Tp, D), 1)
                x3 = jnp.where(rid < Tt, x3, NEG)
            pooled = jnp.max(x3, axis=1)                      # (B, D)
        else:
            # single (B,BT)@(BT,D) MXU selection matmul (one-hot for cls,
            # 1/T averaging for mean)
            srow = jax.lax.broadcasted_iota(jnp.int32, (B, BT), 0)
            scol = jax.lax.broadcasted_iota(jnp.int32, (B, BT), 1)
            if pooling == "cls":
                sel = (scol == srow * Tp + T).astype(jnp.float32)
            else:  # mean
                sel = ((scol >= srow * Tp) & (scol < srow * Tp + Tt)
                       ).astype(jnp.float32) * (1.0 / Tt)
            pooled = jnp.dot(sel, x, preferred_element_type=jnp.float32)

        # --- classifier head (concat folded into split-weight matmuls) -------
        logits = (jnp.dot(pooled, wcx_ref[...], preferred_element_type=jnp.float32)
                  + jnp.dot(binary_ref[...], wcb_ref[...],
                            preferred_element_type=jnp.float32)
                  + bcls_ref[...])
        o_ref[...] = logits

    return kernel, Tt, Tp, BT


# ----------------------------- wrapper --------------------------------------


def _vmem_full(arr):
    """Full-array BlockSpec for a grid of (1,)."""
    nd = arr.ndim
    return pl.BlockSpec(arr.shape, lambda i, _nd=nd: (0,) * _nd)


_STACK_ORDER = ("ln1w", "ln1b",
                "wq", "bq", "wk", "bk", "wv", "bv", "wd", "bd",
                "ln2w", "ln2b",
                "wfc", "bfc", "wproj", "bproj")


def classifier_forward(x, binary, params, pooling="cls"):
    B, T, D = x.shape
    L = len(params["blocks"])
    n_labels = params["bcls"].shape[-1]
    binary_dim = binary.shape[-1]

    kernel, Tt, Tp, BT = _make_fused_kernel(B, T, D, L, n_labels, pooling)

    # stack per-layer weights into (L, ...) arrays (trace-time, outside kernel)
    stacked = [jnp.stack([blk[name] for blk in params["blocks"]], axis=0)
               for name in _STACK_ORDER]
    wcx = params["wcls"][:D]       # (D, n_labels)   — pooled-features part
    wcb = params["wcls"][D:]       # (bin, n_labels) — binary-features part
    operands = [x, binary, params["cls_token"], *stacked, wcx, wcb,
                params["bcls"]]

    # advisory cost estimate for the XLA scheduler
    d_ff = 4 * D
    flops_layer = (8 * BT * D * D            # q/k/v/dense projections
                   + 4 * BT * D * d_ff       # fc + proj
                   + 4 * BT * BT * D)        # scores + attn@v (block-diag)
    flops = int(L * flops_layer + 2 * B * (D + binary_dim) * n_labels)
    transcendentals = int(L * (BT * BT + 2 * BT * d_ff))
    bytes_accessed = int(sum(a.size for a in operands) * 4 + B * n_labels * 4)

    return pl.pallas_call(
        kernel,
        out_shape=jax.ShapeDtypeStruct((B, n_labels), jnp.float32),
        grid_spec=pltpu.PrefetchScalarGridSpec(
            num_scalar_prefetch=0,
            grid=(1,),
            in_specs=[_vmem_full(a) for a in operands],
            out_specs=pl.BlockSpec((B, n_labels), lambda i: (0, 0)),
            scratch_shapes=[pltpu.VMEM((BT, D), jnp.float32)],
        ),
        compiler_params=pltpu.CompilerParams(
            dimension_semantics=("arbitrary",)),
        cost_estimate=pl.CostEstimate(flops=flops,
                                      transcendentals=transcendentals,
                                      bytes_accessed=bytes_accessed),
    )(*operands)


# ----------------------------- pure-JAX reference ---------------------------


def classifier_reference(x, binary, params, pooling="cls"):
    B, _, D = x.shape
    if pooling == "cls":
        cls_tok = jnp.broadcast_to(params["cls_token"], (B, 1, D))
        x = jnp.concatenate([cls_tok, x], axis=1)

    def ln(h, w, b, eps=1e-5):
        mu = jnp.mean(h, -1, keepdims=True)
        var = jnp.mean((h - mu) ** 2, -1, keepdims=True)
        return (h - mu) / jnp.sqrt(var + eps) * w + b

    for blk in params["blocks"]:
        h = ln(x, blk["ln1w"], blk["ln1b"])
        q = h @ blk["wq"] + blk["bq"]
        k = h @ blk["wk"] + blk["bk"]
        v = h @ blk["wv"] + blk["bv"]
        s = jnp.einsum("bqd,bkd->bqk", q, k) / math.sqrt(D)
        a = jax.nn.softmax(s, axis=-1)
        y = jnp.einsum("bqk,bkd->bqd", a, v)
        x = x + y @ blk["wd"] + blk["bd"]
        h2 = ln(x, blk["ln2w"], blk["ln2b"])
        m = jax.nn.gelu(h2 @ blk["wfc"] + blk["bfc"], approximate=False)
        x = x + m @ blk["wproj"] + blk["bproj"]

    if pooling == "cls":
        pooled = x[:, 0, :]
    elif pooling == "mean":
        pooled = jnp.mean(x, axis=1)
    else:
        pooled = jnp.max(x, axis=1)
    feats = jnp.concatenate([pooled, binary], axis=1)
    return feats @ params["wcls"] + params["bcls"]


# ----------------------------- parameter init -------------------------------


def init_params(key, D, n_layer, binary_dim, n_labels):
    """Mirrors Classifier._init_weights: Linear W ~ N(0, 0.02), b = 0,
       LayerNorm = (ones, zeros), cls_token ~ N(0, 1).
       Linear weights stored pre-transposed as (in_features, out_features)."""
    def lin(k, fan_in, fan_out):
        w = 0.02 * jax.random.normal(k, (fan_in, fan_out), jnp.float32)
        b = jnp.zeros((1, fan_out), jnp.float32)
        return w, b

    keys = jax.random.split(key, n_layer * 6 + 2)
    blocks = []
    ki = 0
    for _ in range(n_layer):
        wq, bq = lin(keys[ki + 0], D, D)
        wk, bk = lin(keys[ki + 1], D, D)
        wv, bv = lin(keys[ki + 2], D, D)
        wd, bd = lin(keys[ki + 3], D, D)
        wfc, bfc = lin(keys[ki + 4], D, 4 * D)
        wproj, bproj = lin(keys[ki + 5], 4 * D, D)
        ki += 6
        blocks.append(dict(
            ln1w=jnp.ones((1, D), jnp.float32), ln1b=jnp.zeros((1, D), jnp.float32),
            wq=wq, bq=bq, wk=wk, bk=bk, wv=wv, bv=bv, wd=wd, bd=bd,
            ln2w=jnp.ones((1, D), jnp.float32), ln2b=jnp.zeros((1, D), jnp.float32),
            wfc=wfc, bfc=bfc, wproj=wproj, bproj=bproj,
        ))
    wcls, bcls = lin(keys[ki], D + binary_dim, n_labels)
    cls_token = jax.random.normal(keys[ki + 1], (1, 1, D), jnp.float32)
    return dict(blocks=blocks, wcls=wcls, bcls=bcls, cls_token=cls_token)


# ----------------------------- main ------------------------------------------


if __name__ == "__main__":
    # config: input_dim=32, n_layer=2, binary_dim=4, n_labels=3,
    #         pooling='cls', dropout=0.0 (eval), bias=True, norm_fn=LayerNorm
    B, T, D = 2, 8, 32
    n_layer, binary_dim, n_labels = 2, 4, 3

    key = jax.random.PRNGKey(0)
    k_x, k_bin, k_p = jax.random.split(key, 3)
    x = jax.random.normal(k_x, (B, T, D), jnp.float32)
    binary = jax.random.normal(k_bin, (B, binary_dim), jnp.float32)
    params = init_params(k_p, D, n_layer, binary_dim, n_labels)

    logits = classifier_forward(x, binary, params, pooling="cls")
    jax.block_until_ready(logits)
    assert logits.shape == (B, n_labels)

    ref = classifier_reference(x, binary, params, pooling="cls")
    err = float(jnp.max(jnp.abs(logits - ref)))
    assert err < 2e-3, f"max abs error vs reference: {err}"

    print("KERNEL_OK")
</pallas_src>

<mosaic_0001>
module attributes {stable_mosaic.version = 11 : i64} {
  func.func @kernel(%arg0: i32, %arg1: memref<2x8x32xf32, #tpu.memory_space<vmem>>, %arg2: memref<2x4xf32, #tpu.memory_space<vmem>>, %arg3: memref<1x1x32xf32, #tpu.memory_space<vmem>>, %arg4: memref<2x1x32xf32, #tpu.memory_space<vmem>>, %arg5: memref<2x1x32xf32, #tpu.memory_space<vmem>>, %arg6: memref<2x32x32xf32, #tpu.memory_space<vmem>>, %arg7: memref<2x1x32xf32, #tpu.memory_space<vmem>>, %arg8: memref<2x32x32xf32, #tpu.memory_space<vmem>>, %arg9: memref<2x1x32xf32, #tpu.memory_space<vmem>>, %arg10: memref<2x32x32xf32, #tpu.memory_space<vmem>>, %arg11: memref<2x1x32xf32, #tpu.memory_space<vmem>>, %arg12: memref<2x32x32xf32, #tpu.memory_space<vmem>>, %arg13: memref<2x1x32xf32, #tpu.memory_space<vmem>>, %arg14: memref<2x1x32xf32, #tpu.memory_space<vmem>>, %arg15: memref<2x1x32xf32, #tpu.memory_space<vmem>>, %arg16: memref<2x32x128xf32, #tpu.memory_space<vmem>>, %arg17: memref<2x1x128xf32, #tpu.memory_space<vmem>>, %arg18: memref<2x128x32xf32, #tpu.memory_space<vmem>>, %arg19: memref<2x1x32xf32, #tpu.memory_space<vmem>>, %arg20: memref<32x3xf32, #tpu.memory_space<vmem>>, %arg21: memref<4x3xf32, #tpu.memory_space<vmem>>, %arg22: memref<1x3xf32, #tpu.memory_space<vmem>>, %arg23: memref<2x3xf32, #tpu.memory_space<vmem>>, %arg24: memref<32x32xf32, #tpu.memory_space<vmem>>) attributes {dimension_semantics = [#tpu.dimension_semantics<arbitrary>], iteration_bounds = array<i64: 1>, scalar_prefetch = 0 : i64, scratch_operands = 1 : i64, tpu.core_type = #tpu.core_type<tc>, window_params = [{pipeline_mode = #tpu.pipeline_mode<synchronous>, transform_indices = @transform_0, window_bounds = array<i64: 2, 8, 32>}, {pipeline_mode = #tpu.pipeline_mode<synchronous>, transform_indices = @transform_1, window_bounds = array<i64: 2, 4>}, {pipeline_mode = #tpu.pipeline_mode<synchronous>, transform_indices = @transform_2, window_bounds = array<i64: 1, 1, 32>}, {pipeline_mode = #tpu.pipeline_mode<synchronous>, transform_indices = @transform_3, window_bounds = array<i64: 2, 1, 32>}, {pipeline_mode = #tpu.pipeline_mode<synchronous>, transform_indices = @transform_4, window_bounds = array<i64: 2, 1, 32>}, {pipeline_mode = #tpu.pipeline_mode<synchronous>, transform_indices = @transform_5, window_bounds = array<i64: 2, 32, 32>}, {pipeline_mode = #tpu.pipeline_mode<synchronous>, transform_indices = @transform_6, window_bounds = array<i64: 2, 1, 32>}, {pipeline_mode = #tpu.pipeline_mode<synchronous>, transform_indices = @transform_7, window_bounds = array<i64: 2, 32, 32>}, {pipeline_mode = #tpu.pipeline_mode<synchronous>, transform_indices = @transform_8, window_bounds = array<i64: 2, 1, 32>}, {pipeline_mode = #tpu.pipeline_mode<synchronous>, transform_indices = @transform_9, window_bounds = array<i64: 2, 32, 32>}, {pipeline_mode = #tpu.pipeline_mode<synchronous>, transform_indices = @transform_10, window_bounds = array<i64: 2, 1, 32>}, {pipeline_mode = #tpu.pipeline_mode<synchronous>, transform_indices = @transform_11, window_bounds = array<i64: 2, 32, 32>}, {pipeline_mode = #tpu.pipeline_mode<synchronous>, transform_indices = @transform_12, window_bounds = array<i64: 2, 1, 32>}, {pipeline_mode = #tpu.pipeline_mode<synchronous>, transform_indices = @transform_13, window_bounds = array<i64: 2, 1, 32>}, {pipeline_mode = #tpu.pipeline_mode<synchronous>, transform_indices = @transform_14, window_bounds = array<i64: 2, 1, 32>}, {pipeline_mode = #tpu.pipeline_mode<synchronous>, transform_indices = @transform_15, window_bounds = array<i64: 2, 32, 128>}, {pipeline_mode = #tpu.pipeline_mode<synchronous>, transform_indices = @transform_16, window_bounds = array<i64: 2, 1, 128>}, {pipeline_mode = #tpu.pipeline_mode<synchronous>, transform_indices = @transform_17, window_bounds = array<i64: 2, 128, 32>}, {pipeline_mode = #tpu.pipeline_mode<synchronous>, transform_indices = @transform_18, window_bounds = array<i64: 2, 1, 32>}, {pipeline_mode = #tpu.pipeline_mode<synchronous>, transform_indices = @transform_19, window_bounds = array<i64: 32, 3>}, {pipeline_mode = #tpu.pipeline_mode<synchronous>, transform_indices = @transform_20, window_bounds = array<i64: 4, 3>}, {pipeline_mode = #tpu.pipeline_mode<synchronous>, transform_indices = @transform_21, window_bounds = array<i64: 1, 3>}, {pipeline_mode = #tpu.pipeline_mode<synchronous>, transform_indices = @transform_22, window_bounds = array<i64: 2, 3>}]} {
    %cst = arith.constant 0.000000e+00 : f32
    %0 = vector.broadcast %cst : f32 to vector<32x32xf32>
    %c0 = arith.constant 0 : index
    %c0_0 = arith.constant 0 : index
    %1 = vector.load %arg24[%c0, %c0_0] : memref<32x32xf32, #tpu.memory_space<vmem>>, vector<32x32xf32>
    tpu.vector_store %arg24[%c0, %c0_0], %0 {strides = array<i32>} : memref<32x32xf32, #tpu.memory_space<vmem>>, vector<32x32xf32>,
    %c0_1 = arith.constant 0 : index
    %c0_2 = arith.constant 0 : index
    %c0_3 = arith.constant 0 : index
    %2 = vector.load %arg1[%c0_1, %c0_2, %c0_3] : memref<2x8x32xf32, #tpu.memory_space<vmem>>, vector<1x8x32xf32>
    %3 = vector.shape_cast %2 : vector<1x8x32xf32> to vector<8x32xf32>
    %c0_4 = arith.constant 0 : index
    %c0_5 = arith.constant 0 : index
    %4 = vector.load %arg24[%c0_4, %c0_5] : memref<32x32xf32, #tpu.memory_space<vmem>>, vector<8x32xf32>
    tpu.vector_store %arg24[%c0_4, %c0_5], %3 {strides = array<i32>} : memref<32x32xf32, #tpu.memory_space<vmem>>, vector<8x32xf32>,
    %c0_6 = arith.constant 0 : index
    %c0_7 = arith.constant 0 : index
    %c0_8 = arith.constant 0 : index
    %5 = vector.load %arg3[%c0_6, %c0_7, %c0_8] : memref<1x1x32xf32, #tpu.memory_space<vmem>>, vector<1x1x32xf32>
    %6 = vector.shape_cast %5 : vector<1x1x32xf32> to vector<1x32xf32>
    %c8 = arith.constant 8 : index
    %c0_9 = arith.constant 0 : index
    %7 = vector.load %arg24[%c8, %c0_9] : memref<32x32xf32, #tpu.memory_space<vmem>>, vector<1x32xf32>
    tpu.vector_store %arg24[%c8, %c0_9], %6 {strides = array<i32>} : memref<32x32xf32, #tpu.memory_space<vmem>>, vector<1x32xf32>,
    %c1 = arith.constant 1 : index
    %c0_10 = arith.constant 0 : index
    %c0_11 = arith.constant 0 : index
    %8 = vector.load %arg1[%c1, %c0_10, %c0_11] : memref<2x8x32xf32, #tpu.memory_space<vmem>>, vector<1x8x32xf32>
    %9 = vector.shape_cast %8 : vector<1x8x32xf32> to vector<8x32xf32>
    %c16 = arith.constant 16 : index
    %c0_12 = arith.constant 0 : index
    %10 = vector.load %arg24[%c16, %c0_12] : memref<32x32xf32, #tpu.memory_space<vmem>>, vector<8x32xf32>
    tpu.vector_store %arg24[%c16, %c0_12], %9 {strides = array<i32>} : memref<32x32xf32, #tpu.memory_space<vmem>>, vector<8x32xf32>,
    %c0_13 = arith.constant 0 : index
    %c0_14 = arith.constant 0 : index
    %c0_15 = arith.constant 0 : index
    %11 = vector.load %arg3[%c0_13, %c0_14, %c0_15] : memref<1x1x32xf32, #tpu.memory_space<vmem>>, vector<1x1x32xf32>
    %12 = vector.shape_cast %11 : vector<1x1x32xf32> to vector<1x32xf32>
    %c24 = arith.constant 24 : index
    %c0_16 = arith.constant 0 : index
    %13 = vector.load %arg24[%c24, %c0_16] : memref<32x32xf32, #tpu.memory_space<vmem>>, vector<1x32xf32>
    tpu.vector_store %arg24[%c24, %c0_16], %12 {strides = array<i32>} : memref<32x32xf32, #tpu.memory_space<vmem>>, vector<1x32xf32>,
    %c0_17 = arith.constant 0 : index
    %c0_18 = arith.constant 0 : index
    %14 = vector.load %arg24[%c0_17, %c0_18] : memref<32x32xf32, #tpu.memory_space<vmem>>, vector<32x32xf32>
    %15 = tpu.iota {dimensions = array<i32: 0>} : vector<32x32xi32>
    %16 = tpu.iota {dimensions = array<i32: 1>} : vector<32x32xi32>
    %false = arith.constant false
    %17 = vector.broadcast %false : i1 to vector<32x32xi1>
    %c0_i32 = arith.constant 0 : i32
    %18 = vector.broadcast %c0_i32 : i32 to vector<32x32xi32>
    %19 = arith.cmpi sge, %15, %18 : vector<32x32xi32>
    %c16_i32 = arith.constant 16 : i32
    %20 = vector.broadcast %c16_i32 : i32 to vector<32x32xi32>
    %21 = arith.cmpi slt, %15, %20 : vector<32x32xi32>
    %22 = arith.andi %19, %21 : vector<32x32xi1>
    %c0_i32_19 = arith.constant 0 : i32
    %23 = vector.broadcast %c0_i32_19 : i32 to vector<32x32xi32>
    %24 = arith.cmpi sge, %16, %23 : vector<32x32xi32>
    %c9_i32 = arith.constant 9 : i32
    %25 = vector.broadcast %c9_i32 : i32 to vector<32x32xi32>
    %26 = arith.cmpi slt, %16, %25 : vector<32x32xi32>
    %27 = arith.andi %24, %26 : vector<32x32xi1>
    %28 = arith.andi %22, %27 : vector<32x32xi1>
    %29 = arith.ori %17, %28 : vector<32x32xi1>
    %c16_i32_20 = arith.constant 16 : i32
    %30 = vector.broadcast %c16_i32_20 : i32 to vector<32x32xi32>
    %31 = arith.cmpi sge, %15, %30 : vector<32x32xi32>
    %c32_i32 = arith.constant 32 : i32
    %32 = vector.broadcast %c32_i32 : i32 to vector<32x32xi32>
    %33 = arith.cmpi slt, %15, %32 : vector<32x32xi32>
    %34 = arith.andi %31, %33 : vector<32x32xi1>
    %c16_i32_21 = arith.constant 16 : i32
    %35 = vector.broadcast %c16_i32_21 : i32 to vector<32x32xi32>
    %36 = arith.cmpi sge, %16, %35 : vector<32x32xi32>
    %c25_i32 = arith.constant 25 : i32
    %37 = vector.broadcast %c25_i32 : i32 to vector<32x32xi32>
    %38 = arith.cmpi slt, %16, %37 : vector<32x32xi32>
    %39 = arith.andi %36, %38 : vector<32x32xi1>
    %40 = arith.andi %34, %39 : vector<32x32xi1>
    %41 = arith.ori %29, %40 : vector<32x32xi1>
    %c0_22 = arith.constant 0 : index
    %c0_23 = arith.constant 0 : index
    %c0_24 = arith.constant 0 : index
    %42 = vector.load %arg4[%c0_22, %c0_23, %c0_24] : memref<2x1x32xf32, #tpu.memory_space<vmem>>, vector<1x1x32xf32>
    %43 = vector.shape_cast %42 : vector<1x1x32xf32> to vector<1x32xf32>
    %c0_25 = arith.constant 0 : index
    %c0_26 = arith.constant 0 : index
    %c0_27 = arith.constant 0 : index
    %44 = vector.load %arg5[%c0_25, %c0_26, %c0_27] : memref<2x1x32xf32, #tpu.memory_space<vmem>>, vector<1x1x32xf32>
    %45 = vector.shape_cast %44 : vector<1x1x32xf32> to vector<1x32xf32>
    %cst_28 = arith.constant dense<0.000000e+00> : vector<32xf32>
    %46 = vector.multi_reduction <add>, %14, %cst_28 [1] : vector<32x32xf32> to vector<32xf32>
    %47 = vector.shape_cast %46 : vector<32xf32> to vector<32x1xf32>
    %cst_29 = arith.constant 3.200000e+01 : f32
    %48 = vector.broadcast %cst_29 : f32 to vector<32x1xf32>
    %49 = arith.divf %47, %48 : vector<32x1xf32>
    %50 = vector.broadcast %49 : vector<32x1xf32> to vector<32x32xf32>
    %51 = arith.subf %14, %50 : vector<32x32xf32>
    %52 = arith.mulf %51, %51 : vector<32x32xf32>
    %cst_30 = arith.constant dense<0.000000e+00> : vector<32xf32>
    %53 = vector.multi_reduction <add>, %52, %cst_30 [1] : vector<32x32xf32> to vector<32xf32>
    %54 = vector.shape_cast %53 : vector<32xf32> to vector<32x1xf32>
    %cst_31 = arith.constant 3.200000e+01 : f32
    %55 = vector.broadcast %cst_31 : f32 to vector<32x1xf32>
    %56 = arith.divf %54, %55 : vector<32x1xf32>
    %cst_32 = arith.constant 9.99999974E-6 : f32
    %57 = vector.broadcast %cst_32 : f32 to vector<32x1xf32>
    %58 = arith.addf %56, %57 : vector<32x1xf32>
    %59 = math.rsqrt %58 : vector<32x1xf32>
    %60 = vector.broadcast %59 : vector<32x1xf32> to vector<32x32xf32>
    %61 = arith.mulf %51, %60 : vector<32x32xf32>
    %62 = vector.broadcast %43 : vector<1x32xf32> to vector<32x32xf32>
    %63 = arith.mulf %61, %62 : vector<32x32xf32>
    %64 = vector.broadcast %45 : vector<1x32xf32> to vector<32x32xf32>
    %65 = arith.addf %63, %64 : vector<32x32xf32>
    %c0_33 = arith.constant 0 : index
    %c0_34 = arith.constant 0 : index
    %c0_35 = arith.constant 0 : index
    %66 = vector.load %arg6[%c0_33, %c0_34, %c0_35] : memref<2x32x32xf32, #tpu.memory_space<vmem>>, vector<1x32x32xf32>
    %67 = vector.shape_cast %66 : vector<1x32x32xf32> to vector<32x32xf32>
    %cst_36 = arith.constant dense<0.000000e+00> : vector<32x32xf32>
    %68 = tpu.matmul %65, %67, %cst_36 {dimension_numbers = #tpu.dot_dimension_numbers<[1], [0], [0], [1], [0, 0, 1, 1], [], []>} : vector<32x32xf32>, vector<32x32xf32>, vector<32x32xf32> -> vector<32x32xf32>
    %c0_37 = arith.constant 0 : index
    %c0_38 = arith.constant 0 : index
    %c0_39 = arith.constant 0 : index
    %69 = vector.load %arg7[%c0_37, %c0_38, %c0_39] : memref<2x1x32xf32, #tpu.memory_space<vmem>>, vector<1x1x32xf32>
    %70 = vector.shape_cast %69 : vector<1x1x32xf32> to vector<1x32xf32>
    %71 = vector.broadcast %70 : vector<1x32xf32> to vector<32x32xf32>
    %72 = arith.addf %68, %71 : vector<32x32xf32>
    %c0_40 = arith.constant 0 : index
    %c0_41 = arith.constant 0 : index
    %c0_42 = arith.constant 0 : index
    %73 = vector.load %arg8[%c0_40, %c0_41, %c0_42] : memref<2x32x32xf32, #tpu.memory_space<vmem>>, vector<1x32x32xf32>
    %74 = vector.shape_cast %73 : vector<1x32x32xf32> to vector<32x32xf32>
    %cst_43 = arith.constant dense<0.000000e+00> : vector<32x32xf32>
    %75 = tpu.matmul %65, %74, %cst_43 {dimension_numbers = #tpu.dot_dimension_numbers<[1], [0], [0], [1], [0, 0, 1, 1], [], []>} : vector<32x32xf32>, vector<32x32xf32>, vector<32x32xf32> -> vector<32x32xf32>
    %c0_44 = arith.constant 0 : index
    %c0_45 = arith.constant 0 : index
    %c0_46 = arith.constant 0 : index
    %76 = vector.load %arg9[%c0_44, %c0_45, %c0_46] : memref<2x1x32xf32, #tpu.memory_space<vmem>>, vector<1x1x32xf32>
    %77 = vector.shape_cast %76 : vector<1x1x32xf32> to vector<1x32xf32>
    %78 = vector.broadcast %77 : vector<1x32xf32> to vector<32x32xf32>
    %79 = arith.addf %75, %78 : vector<32x32xf32>
    %c0_47 = arith.constant 0 : index
    %c0_48 = arith.constant 0 : index
    %c0_49 = arith.constant 0 : index
    %80 = vector.load %arg10[%c0_47, %c0_48, %c0_49] : memref<2x32x32xf32, #tpu.memory_space<vmem>>, vector<1x32x32xf32>
    %81 = vector.shape_cast %80 : vector<1x32x32xf32> to vector<32x32xf32>
    %cst_50 = arith.constant dense<0.000000e+00> : vector<32x32xf32>
    %82 = tpu.matmul %65, %81, %cst_50 {dimension_numbers = #tpu.dot_dimension_numbers<[1], [0], [0], [1], [0, 0, 1, 1], [], []>} : vector<32x32xf32>, vector<32x32xf32>, vector<32x32xf32> -> vector<32x32xf32>
    %c0_51 = arith.constant 0 : index
    %c0_52 = arith.constant 0 : index
    %c0_53 = arith.constant 0 : index
    %83 = vector.load %arg11[%c0_51, %c0_52, %c0_53] : memref<2x1x32xf32, #tpu.memory_space<vmem>>, vector<1x1x32xf32>
    %84 = vector.shape_cast %83 : vector<1x1x32xf32> to vector<1x32xf32>
    %85 = vector.broadcast %84 : vector<1x32xf32> to vector<32x32xf32>
    %86 = arith.addf %82, %85 : vector<32x32xf32>
    %cst_54 = arith.constant dense<0.000000e+00> : vector<32x32xf32>
    %87 = tpu.matmul %72, %79, %cst_54 {dimension_numbers = #tpu.dot_dimension_numbers<[1], [1], [0], [0], [0, 0, 1, 0], [], []>} : vector<32x32xf32>, vector<32x32xf32>, vector<32x32xf32> -> vector<32x32xf32>
    %cst_55 = arith.constant 0.176776692 : f32
    %88 = vector.broadcast %cst_55 : f32 to vector<32x32xf32>
    %89 = arith.mulf %87, %88 : vector<32x32xf32>
    %cst_56 = arith.constant -1.000000e+30 : f32
    %90 = vector.broadcast %cst_56 : f32 to vector<32x32xf32>
    %91 = arith.select %41, %89, %90 : vector<32x32xi1>, vector<32x32xf32>
    %cst_57 = arith.constant dense<0xFF800000> : vector<32xf32>
    %92 = vector.multi_reduction <maximumf>, %91, %cst_57 [1] : vector<32x32xf32> to vector<32xf32>
    %93 = vector.shape_cast %92 : vector<32xf32> to vector<32x1xf32>
    %94 = vector.broadcast %93 : vector<32x1xf32> to vector<32x32xf32>
    %95 = arith.subf %91, %94 : vector<32x32xf32>
    %96 = math.exp %95 : vector<32x32xf32>
    %cst_58 = arith.constant dense<0.000000e+00> : vector<32xf32>
    %97 = vector.multi_reduction <add>, %96, %cst_58 [1] : vector<32x32xf32> to vector<32xf32>
    %98 = vector.shape_cast %97 : vector<32xf32> to vector<32x1xf32>
    %99 = tpu.reciprocal %98 {approx = true} : vector<32x1xf32> -> vector<32x1xf32>
    %100 = vector.broadcast %99 : vector<32x1xf32> to vector<32x32xf32>
    %101 = arith.mulf %96, %100 : vector<32x32xf32>
    %cst_59 = arith.constant dense<0.000000e+00> : vector<32x32xf32>
    %102 = tpu.matmul %101, %86, %cst_59 {dimension_numbers = #tpu.dot_dimension_numbers<[1], [0], [0], [1], [0, 0, 1, 1], [], []>} : vector<32x32xf32>, vector<32x32xf32>, vector<32x32xf32> -> vector<32x32xf32>
    %c0_60 = arith.constant 0 : index
    %c0_61 = arith.constant 0 : index
    %c0_62 = arith.constant 0 : index
    %103 = vector.load %arg12[%c0_60, %c0_61, %c0_62] : memref<2x32x32xf32, #tpu.memory_space<vmem>>, vector<1x32x32xf32>
    %104 = vector.shape_cast %103 : vector<1x32x32xf32> to vector<32x32xf32>
    %cst_63 = arith.constant dense<0.000000e+00> : vector<32x32xf32>
    %105 = tpu.matmul %102, %104, %cst_63 {dimension_numbers = #tpu.dot_dimension_numbers<[1], [0], [0], [1], [0, 0, 1, 1], [], []>} : vector<32x32xf32>, vector<32x32xf32>, vector<32x32xf32> -> vector<32x32xf32>
    %106 = arith.addf %14, %105 : vector<32x32xf32>
    %c0_64 = arith.constant 0 : index
    %c0_65 = arith.constant 0 : index
    %c0_66 = arith.constant 0 : index
    %107 = vector.load %arg13[%c0_64, %c0_65, %c0_66] : memref<2x1x32xf32, #tpu.memory_space<vmem>>, vector<1x1x32xf32>
    %108 = vector.shape_cast %107 : vector<1x1x32xf32> to vector<1x32xf32>
    %109 = vector.broadcast %108 : vector<1x32xf32> to vector<32x32xf32>
    %110 = arith.addf %106, %109 : vector<32x32xf32>
    %c0_67 = arith.constant 0 : index
    %c0_68 = arith.constant 0 : index
    %c0_69 = arith.constant 0 : index
    %111 = vector.load %arg14[%c0_67, %c0_68, %c0_69] : memref<2x1x32xf32, #tpu.memory_space<vmem>>, vector<1x1x32xf32>
    %112 = vector.shape_cast %111 : vector<1x1x32xf32> to vector<1x32xf32>
    %c0_70 = arith.constant 0 : index
    %c0_71 = arith.constant 0 : index
    %c0_72 = arith.constant 0 : index
    %113 = vector.load %arg15[%c0_70, %c0_71, %c0_72] : memref<2x1x32xf32, #tpu.memory_space<vmem>>, vector<1x1x32xf32>
    %114 = vector.shape_cast %113 : vector<1x1x32xf32> to vector<1x32xf32>
    %cst_73 = arith.constant dense<0.000000e+00> : vector<32xf32>
    %115 = vector.multi_reduction <add>, %110, %cst_73 [1] : vector<32x32xf32> to vector<32xf32>
    %116 = vector.shape_cast %115 : vector<32xf32> to vector<32x1xf32>
    %cst_74 = arith.constant 3.200000e+01 : f32
    %117 = vector.broadcast %cst_74 : f32 to vector<32x1xf32>
    %118 = arith.divf %116, %117 : vector<32x1xf32>
    %119 = vector.broadcast %118 : vector<32x1xf32> to vector<32x32xf32>
    %120 = arith.subf %110, %119 : vector<32x32xf32>
    %121 = arith.mulf %120, %120 : vector<32x32xf32>
    %cst_75 = arith.constant dense<0.000000e+00> : vector<32xf32>
    %122 = vector.multi_reduction <add>, %121, %cst_75 [1] : vector<32x32xf32> to vector<32xf32>
    %123 = vector.shape_cast %122 : vector<32xf32> to vector<32x1xf32>
    %cst_76 = arith.constant 3.200000e+01 : f32
    %124 = vector.broadcast %cst_76 : f32 to vector<32x1xf32>
    %125 = arith.divf %123, %124 : vector<32x1xf32>
    %cst_77 = arith.constant 9.99999974E-6 : f32
    %126 = vector.broadcast %cst_77 : f32 to vector<32x1xf32>
    %127 = arith.addf %125, %126 : vector<32x1xf32>
    %128 = math.rsqrt %127 : vector<32x1xf32>
    %129 = vector.broadcast %128 : vector<32x1xf32> to vector<32x32xf32>
    %130 = arith.mulf %120, %129 : vector<32x32xf32>
    %131 = vector.broadcast %112 : vector<1x32xf32> to vector<32x32xf32>
    %132 = arith.mulf %130, %131 : vector<32x32xf32>
    %133 = vector.broadcast %114 : vector<1x32xf32> to vector<32x32xf32>
    %134 = arith.addf %132, %133 : vector<32x32xf32>
    %c0_78 = arith.constant 0 : index
    %c0_79 = arith.constant 0 : index
    %c0_80 = arith.constant 0 : index
    %135 = vector.load %arg16[%c0_78, %c0_79, %c0_80] : memref<2x32x128xf32, #tpu.memory_space<vmem>>, vector<1x32x128xf32>
    %136 = vector.shape_cast %135 : vector<1x32x128xf32> to vector<32x128xf32>
    %cst_81 = arith.constant dense<0.000000e+00> : vector<32x128xf32>
    %137 = tpu.matmul %134, %136, %cst_81 {dimension_numbers = #tpu.dot_dimension_numbers<[1], [0], [0], [1], [0, 0, 1, 1], [], []>} : vector<32x32xf32>, vector<32x128xf32>, vector<32x128xf32> -> vector<32x128xf32>
    %c0_82 = arith.constant 0 : index
    %c0_83 = arith.constant 0 : index
    %c0_84 = arith.constant 0 : index
    %138 = vector.load %arg17[%c0_82, %c0_83, %c0_84] : memref<2x1x128xf32, #tpu.memory_space<vmem>>, vector<1x1x128xf32>
    %139 = vector.shape_cast %138 : vector<1x1x128xf32> to vector<1x128xf32>
    %140 = vector.broadcast %139 : vector<1x128xf32> to vector<32x128xf32>
    %141 = arith.addf %137, %140 : vector<32x128xf32>
    %cst_85 = arith.constant 5.000000e-01 : f32
    %142 = vector.broadcast %cst_85 : f32 to vector<32x128xf32>
    %143 = arith.mulf %142, %141 : vector<32x128xf32>
    %cst_86 = arith.constant 0.707106769 : f32
    %144 = vector.broadcast %cst_86 : f32 to vector<32x128xf32>
    %145 = arith.mulf %141, %144 : vector<32x128xf32>
    %cst_87 = arith.constant 0.000000e+00 : f32
    %146 = vector.broadcast %cst_87 : f32 to vector<32x128xf32>
    %147 = arith.cmpf oge, %145, %146 : vector<32x128xf32>
    %cst_88 = arith.constant 1.000000e+00 : f32
    %cst_89 = arith.constant -1.000000e+00 : f32
    %148 = vector.broadcast %cst_88 : f32 to vector<32x128xf32>
    %149 = vector.broadcast %cst_89 : f32 to vector<32x128xf32>
    %150 = arith.select %147, %148, %149 : vector<32x128xi1>, vector<32x128xf32>
    %151 = arith.mulf %145, %150 : vector<32x128xf32>
    %cst_90 = arith.constant 0.327591091 : f32
    %152 = vector.broadcast %cst_90 : f32 to vector<32x128xf32>
    %153 = arith.mulf %152, %151 : vector<32x128xf32>
    %cst_91 = arith.constant 1.000000e+00 : f32
    %154 = vector.broadcast %cst_91 : f32 to vector<32x128xf32>
    %155 = arith.addf %154, %153 : vector<32x128xf32>
    %cst_92 = arith.constant 1.000000e+00 : f32
    %156 = vector.broadcast %cst_92 : f32 to vector<32x128xf32>
    %157 = arith.divf %156, %155 : vector<32x128xf32>
    %cst_93 = arith.constant 1.06140542 : f32
    %158 = vector.broadcast %cst_93 : f32 to vector<32x128xf32>
    %159 = arith.mulf %158, %157 : vector<32x128xf32>
    %cst_94 = arith.constant -1.45315206 : f32
    %160 = vector.broadcast %cst_94 : f32 to vector<32x128xf32>
    %161 = arith.addf %159, %160 : vector<32x128xf32>
    %162 = arith.mulf %161, %157 : vector<32x128xf32>
    %cst_95 = arith.constant 1.42141378 : f32
    %163 = vector.broadcast %cst_95 : f32 to vector<32x128xf32>
    %164 = arith.addf %162, %163 : vector<32x128xf32>
    %165 = arith.mulf %164, %157 : vector<32x128xf32>
    %cst_96 = arith.constant -0.284496725 : f32
    %166 = vector.broadcast %cst_96 : f32 to vector<32x128xf32>
    %167 = arith.addf %165, %166 : vector<32x128xf32>
    %168 = arith.mulf %167, %157 : vector<32x128xf32>
    %cst_97 = arith.constant 0.254829586 : f32
    %169 = vector.broadcast %cst_97 : f32 to vector<32x128xf32>
    %170 = arith.addf %168, %169 : vector<32x128xf32>
    %171 = arith.mulf %170, %157 : vector<32x128xf32>
    %cst_98 = arith.constant 0.000000e+00 : f32
    %172 = vector.broadcast %cst_98 : f32 to vector<32x128xf32>
    %173 = arith.subf %172, %151 : vector<32x128xf32>
    %174 = arith.mulf %173, %151 : vector<32x128xf32>
    %175 = math.exp %174 : vector<32x128xf32>
    %176 = arith.mulf %171, %175 : vector<32x128xf32>
    %cst_99 = arith.constant 1.000000e+00 : f32
    %177 = vector.broadcast %cst_99 : f32 to vector<32x128xf32>
    %178 = arith.subf %177, %176 : vector<32x128xf32>
    %179 = arith.mulf %150, %178 : vector<32x128xf32>
    %cst_100 = arith.constant 1.000000e+00 : f32
    %180 = vector.broadcast %cst_100 : f32 to vector<32x128xf32>
    %181 = arith.addf %180, %179 : vector<32x128xf32>
    %182 = arith.mulf %143, %181 : vector<32x128xf32>
    %c0_101 = arith.constant 0 : index
    %c0_102 = arith.constant 0 : index
    %c0_103 = arith.constant 0 : index
    %183 = vector.load %arg18[%c0_101, %c0_102, %c0_103] : memref<2x128x32xf32, #tpu.memory_space<vmem>>, vector<1x128x32xf32>
    %184 = vector.shape_cast %183 : vector<1x128x32xf32> to vector<128x32xf32>
    %cst_104 = arith.constant dense<0.000000e+00> : vector<32x32xf32>
    %185 = tpu.matmul %182, %184, %cst_104 {dimension_numbers = #tpu.dot_dimension_numbers<[1], [0], [0], [1], [0, 0, 1, 1], [], []>} : vector<32x128xf32>, vector<128x32xf32>, vector<32x32xf32> -> vector<32x32xf32>
    %186 = arith.addf %110, %185 : vector<32x32xf32>
    %c0_105 = arith.constant 0 : index
    %c0_106 = arith.constant 0 : index
    %c0_107 = arith.constant 0 : index
    %187 = vector.load %arg19[%c0_105, %c0_106, %c0_107] : memref<2x1x32xf32, #tpu.memory_space<vmem>>, vector<1x1x32xf32>
    %188 = vector.shape_cast %187 : vector<1x1x32xf32> to vector<1x32xf32>
    %189 = vector.broadcast %188 : vector<1x32xf32> to vector<32x32xf32>
    %190 = arith.addf %186, %189 : vector<32x32xf32>
    %c1_108 = arith.constant 1 : index
    %c0_109 = arith.constant 0 : index
    %c0_110 = arith.constant 0 : index
    %191 = vector.load %arg4[%c1_108, %c0_109, %c0_110] : memref<2x1x32xf32, #tpu.memory_space<vmem>>, vector<1x1x32xf32>
    %192 = vector.shape_cast %191 : vector<1x1x32xf32> to vector<1x32xf32>
    %c1_111 = arith.constant 1 : index
    %c0_112 = arith.constant 0 : index
    %c0_113 = arith.constant 0 : index
    %193 = vector.load %arg5[%c1_111, %c0_112, %c0_113] : memref<2x1x32xf32, #tpu.memory_space<vmem>>, vector<1x1x32xf32>
    %194 = vector.shape_cast %193 : vector<1x1x32xf32> to vector<1x32xf32>
    %cst_114 = arith.constant dense<0.000000e+00> : vector<32xf32>
    %195 = vector.multi_reduction <add>, %190, %cst_114 [1] : vector<32x32xf32> to vector<32xf32>
    %196 = vector.shape_cast %195 : vector<32xf32> to vector<32x1xf32>
    %cst_115 = arith.constant 3.200000e+01 : f32
    %197 = vector.broadcast %cst_115 : f32 to vector<32x1xf32>
    %198 = arith.divf %196, %197 : vector<32x1xf32>
    %199 = vector.broadcast %198 : vector<32x1xf32> to vector<32x32xf32>
    %200 = arith.subf %190, %199 : vector<32x32xf32>
    %201 = arith.mulf %200, %200 : vector<32x32xf32>
    %cst_116 = arith.constant dense<0.000000e+00> : vector<32xf32>
    %202 = vector.multi_reduction <add>, %201, %cst_116 [1] : vector<32x32xf32> to vector<32xf32>
    %203 = vector.shape_cast %202 : vector<32xf32> to vector<32x1xf32>
    %cst_117 = arith.constant 3.200000e+01 : f32
    %204 = vector.broadcast %cst_117 : f32 to vector<32x1xf32>
    %205 = arith.divf %203, %204 : vector<32x1xf32>
    %cst_118 = arith.constant 9.99999974E-6 : f32
    %206 = vector.broadcast %cst_118 : f32 to vector<32x1xf32>
    %207 = arith.addf %205, %206 : vector<32x1xf32>
    %208 = math.rsqrt %207 : vector<32x1xf32>
    %209 = vector.broadcast %208 : vector<32x1xf32> to vector<32x32xf32>
    %210 = arith.mulf %200, %209 : vector<32x32xf32>
    %211 = vector.broadcast %192 : vector<1x32xf32> to vector<32x32xf32>
    %212 = arith.mulf %210, %211 : vector<32x32xf32>
    %213 = vector.broadcast %194 : vector<1x32xf32> to vector<32x32xf32>
    %214 = arith.addf %212, %213 : vector<32x32xf32>
    %c1_119 = arith.constant 1 : index
    %c0_120 = arith.constant 0 : index
    %c0_121 = arith.constant 0 : index
    %215 = vector.load %arg6[%c1_119, %c0_120, %c0_121] : memref<2x32x32xf32, #tpu.memory_space<vmem>>, vector<1x32x32xf32>
    %216 = vector.shape_cast %215 : vector<1x32x32xf32> to vector<32x32xf32>
    %cst_122 = arith.constant dense<0.000000e+00> : vector<32x32xf32>
    %217 = tpu.matmul %214, %216, %cst_122 {dimension_numbers = #tpu.dot_dimension_numbers<[1], [0], [0], [1], [0, 0, 1, 1], [], []>} : vector<32x32xf32>, vector<32x32xf32>, vector<32x32xf32> -> vector<32x32xf32>
    %c1_123 = arith.constant 1 : index
    %c0_124 = arith.constant 0 : index
    %c0_125 = arith.constant 0 : index
    %218 = vector.load %arg7[%c1_123, %c0_124, %c0_125] : memref<2x1x32xf32, #tpu.memory_space<vmem>>, vector<1x1x32xf32>
    %219 = vector.shape_cast %218 : vector<1x1x32xf32> to vector<1x32xf32>
    %220 = vector.broadcast %219 : vector<1x32xf32> to vector<32x32xf32>
    %221 = arith.addf %217, %220 : vector<32x32xf32>
    %c1_126 = arith.constant 1 : index
    %c0_127 = arith.constant 0 : index
    %c0_128 = arith.constant 0 : index
    %222 = vector.load %arg8[%c1_126, %c0_127, %c0_128] : memref<2x32x32xf32, #tpu.memory_space<vmem>>, vector<1x32x32xf32>
    %223 = vector.shape_cast %222 : vector<1x32x32xf32> to vector<32x32xf32>
    %cst_129 = arith.constant dense<0.000000e+00> : vector<32x32xf32>
    %224 = tpu.matmul %214, %223, %cst_129 {dimension_numbers = #tpu.dot_dimension_numbers<[1], [0], [0], [1], [0, 0, 1, 1], [], []>} : vector<32x32xf32>, vector<32x32xf32>, vector<32x32xf32> -> vector<32x32xf32>
    %c1_130 = arith.constant 1 : index
    %c0_131 = arith.constant 0 : index
    %c0_132 = arith.constant 0 : index
    %225 = vector.load %arg9[%c1_130, %c0_131, %c0_132] : memref<2x1x32xf32, #tpu.memory_space<vmem>>, vector<1x1x32xf32>
    %226 = vector.shape_cast %225 : vector<1x1x32xf32> to vector<1x32xf32>
    %227 = vector.broadcast %226 : vector<1x32xf32> to vector<32x32xf32>
    %228 = arith.addf %224, %227 : vector<32x32xf32>
    %c1_133 = arith.constant 1 : index
    %c0_134 = arith.constant 0 : index
    %c0_135 = arith.constant 0 : index
    %229 = vector.load %arg10[%c1_133, %c0_134, %c0_135] : memref<2x32x32xf32, #tpu.memory_space<vmem>>, vector<1x32x32xf32>
    %230 = vector.shape_cast %229 : vector<1x32x32xf32> to vector<32x32xf32>
    %cst_136 = arith.constant dense<0.000000e+00> : vector<32x32xf32>
    %231 = tpu.matmul %214, %230, %cst_136 {dimension_numbers = #tpu.dot_dimension_numbers<[1], [0], [0], [1], [0, 0, 1, 1], [], []>} : vector<32x32xf32>, vector<32x32xf32>, vector<32x32xf32> -> vector<32x32xf32>
    %c1_137 = arith.constant 1 : index
    %c0_138 = arith.constant 0 : index
    %c0_139 = arith.constant 0 : index
    %232 = vector.load %arg11[%c1_137, %c0_138, %c0_139] : memref<2x1x32xf32, #tpu.memory_space<vmem>>, vector<1x1x32xf32>
    %233 = vector.shape_cast %232 : vector<1x1x32xf32> to vector<1x32xf32>
    %234 = vector.broadcast %233 : vector<1x32xf32> to vector<32x32xf32>
    %235 = arith.addf %231, %234 : vector<32x32xf32>
    %cst_140 = arith.constant dense<0.000000e+00> : vector<32x32xf32>
    %236 = tpu.matmul %221, %228, %cst_140 {dimension_numbers = #tpu.dot_dimension_numbers<[1], [1], [0], [0], [0, 0, 1, 0], [], []>} : vector<32x32xf32>, vector<32x32xf32>, vector<32x32xf32> -> vector<32x32xf32>
    %cst_141 = arith.constant 0.176776692 : f32
    %237 = vector.broadcast %cst_141 : f32 to vector<32x32xf32>
    %238 = arith.mulf %236, %237 : vector<32x32xf32>
    %cst_142 = arith.constant -1.000000e+30 : f32
    %239 = vector.broadcast %cst_142 : f32 to vector<32x32xf32>
    %240 = arith.select %41, %238, %239 : vector<32x32xi1>, vector<32x32xf32>
    %cst_143 = arith.constant dense<0xFF800000> : vector<32xf32>
    %241 = vector.multi_reduction <maximumf>, %240, %cst_143 [1] : vector<32x32xf32> to vector<32xf32>
    %242 = vector.shape_cast %241 : vector<32xf32> to vector<32x1xf32>
    %243 = vector.broadcast %242 : vector<32x1xf32> to vector<32x32xf32>
    %244 = arith.subf %240, %243 : vector<32x32xf32>
    %245 = math.exp %244 : vector<32x32xf32>
    %cst_144 = arith.constant dense<0.000000e+00> : vector<32xf32>
    %246 = vector.multi_reduction <add>, %245, %cst_144 [1] : vector<32x32xf32> to vector<32xf32>
    %247 = vector.shape_cast %246 : vector<32xf32> to vector<32x1xf32>
    %248 = tpu.reciprocal %247 {approx = true} : vector<32x1xf32> -> vector<32x1xf32>
    %249 = vector.broadcast %248 : vector<32x1xf32> to vector<32x32xf32>
    %250 = arith.mulf %245, %249 : vector<32x32xf32>
    %cst_145 = arith.constant dense<0.000000e+00> : vector<32x32xf32>
    %251 = tpu.matmul %250, %235, %cst_145 {dimension_numbers = #tpu.dot_dimension_numbers<[1], [0], [0], [1], [0, 0, 1, 1], [], []>} : vector<32x32xf32>, vector<32x32xf32>, vector<32x32xf32> -> vector<32x32xf32>
    %c1_146 = arith.constant 1 : index
    %c0_147 = arith.constant 0 : index
    %c0_148 = arith.constant 0 : index
    %252 = vector.load %arg12[%c1_146, %c0_147, %c0_148] : memref<2x32x32xf32, #tpu.memory_space<vmem>>, vector<1x32x32xf32>
    %253 = vector.shape_cast %252 : vector<1x32x32xf32> to vector<32x32xf32>
    %cst_149 = arith.constant dense<0.000000e+00> : vector<32x32xf32>
    %254 = tpu.matmul %251, %253, %cst_149 {dimension_numbers = #tpu.dot_dimension_numbers<[1], [0], [0], [1], [0, 0, 1, 1], [], []>} : vector<32x32xf32>, vector<32x32xf32>, vector<32x32xf32> -> vector<32x32xf32>
    %255 = arith.addf %190, %254 : vector<32x32xf32>
    %c1_150 = arith.constant 1 : index
    %c0_151 = arith.constant 0 : index
    %c0_152 = arith.constant 0 : index
    %256 = vector.load %arg13[%c1_150, %c0_151, %c0_152] : memref<2x1x32xf32, #tpu.memory_space<vmem>>, vector<1x1x32xf32>
    %257 = vector.shape_cast %256 : vector<1x1x32xf32> to vector<1x32xf32>
    %258 = vector.broadcast %257 : vector<1x32xf32> to vector<32x32xf32>
    %259 = arith.addf %255, %258 : vector<32x32xf32>
    %c1_153 = arith.constant 1 : index
    %c0_154 = arith.constant 0 : index
    %c0_155 = arith.constant 0 : index
    %260 = vector.load %arg14[%c1_153, %c0_154, %c0_155] : memref<2x1x32xf32, #tpu.memory_space<vmem>>, vector<1x1x32xf32>
    %261 = vector.shape_cast %260 : vector<1x1x32xf32> to vector<1x32xf32>
    %c1_156 = arith.constant 1 : index
    %c0_157 = arith.constant 0 : index
    %c0_158 = arith.constant 0 : index
    %262 = vector.load %arg15[%c1_156, %c0_157, %c0_158] : memref<2x1x32xf32, #tpu.memory_space<vmem>>, vector<1x1x32xf32>
    %263 = vector.shape_cast %262 : vector<1x1x32xf32> to vector<1x32xf32>
    %cst_159 = arith.constant dense<0.000000e+00> : vector<32xf32>
    %264 = vector.multi_reduction <add>, %259, %cst_159 [1] : vector<32x32xf32> to vector<32xf32>
    %265 = vector.shape_cast %264 : vector<32xf32> to vector<32x1xf32>
    %cst_160 = arith.constant 3.200000e+01 : f32
    %266 = vector.broadcast %cst_160 : f32 to vector<32x1xf32>
    %267 = arith.divf %265, %266 : vector<32x1xf32>
    %268 = vector.broadcast %267 : vector<32x1xf32> to vector<32x32xf32>
    %269 = arith.subf %259, %268 : vector<32x32xf32>
    %270 = arith.mulf %269, %269 : vector<32x32xf32>
    %cst_161 = arith.constant dense<0.000000e+00> : vector<32xf32>
    %271 = vector.multi_reduction <add>, %270, %cst_161 [1] : vector<32x32xf32> to vector<32xf32>
    %272 = vector.shape_cast %271 : vector<32xf32> to vector<32x1xf32>
    %cst_162 = arith.constant 3.200000e+01 : f32
    %273 = vector.broadcast %cst_162 : f32 to vector<32x1xf32>
    %274 = arith.divf %272, %273 : vector<32x1xf32>
    %cst_163 = arith.constant 9.99999974E-6 : f32
    %275 = vector.broadcast %cst_163 : f32 to vector<32x1xf32>
    %276 = arith.addf %274, %275 : vector<32x1xf32>
    %277 = math.rsqrt %276 : vector<32x1xf32>
    %278 = vector.broadcast %277 : vector<32x1xf32> to vector<32x32xf32>
    %279 = arith.mulf %269, %278 : vector<32x32xf32>
    %280 = vector.broadcast %261 : vector<1x32xf32> to vector<32x32xf32>
    %281 = arith.mulf %279, %280 : vector<32x32xf32>
    %282 = vector.broadcast %263 : vector<1x32xf32> to vector<32x32xf32>
    %283 = arith.addf %281, %282 : vector<32x32xf32>
    %c1_164 = arith.constant 1 : index
    %c0_165 = arith.constant 0 : index
    %c0_166 = arith.constant 0 : index
    %284 = vector.load %arg16[%c1_164, %c0_165, %c0_166] : memref<2x32x128xf32, #tpu.memory_space<vmem>>, vector<1x32x128xf32>
    %285 = vector.shape_cast %284 : vector<1x32x128xf32> to vector<32x128xf32>
    %cst_167 = arith.constant dense<0.000000e+00> : vector<32x128xf32>
    %286 = tpu.matmul %283, %285, %cst_167 {dimension_numbers = #tpu.dot_dimension_numbers<[1], [0], [0], [1], [0, 0, 1, 1], [], []>} : vector<32x32xf32>, vector<32x128xf32>, vector<32x128xf32> -> vector<32x128xf32>
    %c1_168 = arith.constant 1 : index
    %c0_169 = arith.constant 0 : index
    %c0_170 = arith.constant 0 : index
    %287 = vector.load %arg17[%c1_168, %c0_169, %c0_170] : memref<2x1x128xf32, #tpu.memory_space<vmem>>, vector<1x1x128xf32>
    %288 = vector.shape_cast %287 : vector<1x1x128xf32> to vector<1x128xf32>
    %289 = vector.broadcast %288 : vector<1x128xf32> to vector<32x128xf32>
    %290 = arith.addf %286, %289 : vector<32x128xf32>
    %cst_171 = arith.constant 5.000000e-01 : f32
    %291 = vector.broadcast %cst_171 : f32 to vector<32x128xf32>
    %292 = arith.mulf %291, %290 : vector<32x128xf32>
    %cst_172 = arith.constant 0.707106769 : f32
    %293 = vector.broadcast %cst_172 : f32 to vector<32x128xf32>
    %294 = arith.mulf %290, %293 : vector<32x128xf32>
    %cst_173 = arith.constant 0.000000e+00 : f32
    %295 = vector.broadcast %cst_173 : f32 to vector<32x128xf32>
    %296 = arith.cmpf oge, %294, %295 : vector<32x128xf32>
    %cst_174 = arith.constant 1.000000e+00 : f32
    %cst_175 = arith.constant -1.000000e+00 : f32
    %297 = vector.broadcast %cst_174 : f32 to vector<32x128xf32>
    %298 = vector.broadcast %cst_175 : f32 to vector<32x128xf32>
    %299 = arith.select %296, %297, %298 : vector<32x128xi1>, vector<32x128xf32>
    %300 = arith.mulf %294, %299 : vector<32x128xf32>
    %cst_176 = arith.constant 0.327591091 : f32
    %301 = vector.broadcast %cst_176 : f32 to vector<32x128xf32>
    %302 = arith.mulf %301, %300 : vector<32x128xf32>
    %cst_177 = arith.constant 1.000000e+00 : f32
    %303 = vector.broadcast %cst_177 : f32 to vector<32x128xf32>
    %304 = arith.addf %303, %302 : vector<32x128xf32>
    %cst_178 = arith.constant 1.000000e+00 : f32
    %305 = vector.broadcast %cst_178 : f32 to vector<32x128xf32>
    %306 = arith.divf %305, %304 : vector<32x128xf32>
    %cst_179 = arith.constant 1.06140542 : f32
    %307 = vector.broadcast %cst_179 : f32 to vector<32x128xf32>
    %308 = arith.mulf %307, %306 : vector<32x128xf32>
    %cst_180 = arith.constant -1.45315206 : f32
    %309 = vector.broadcast %cst_180 : f32 to vector<32x128xf32>
    %310 = arith.addf %308, %309 : vector<32x128xf32>
    %311 = arith.mulf %310, %306 : vector<32x128xf32>
    %cst_181 = arith.constant 1.42141378 : f32
    %312 = vector.broadcast %cst_181 : f32 to vector<32x128xf32>
    %313 = arith.addf %311, %312 : vector<32x128xf32>
    %314 = arith.mulf %313, %306 : vector<32x128xf32>
    %cst_182 = arith.constant -0.284496725 : f32
    %315 = vector.broadcast %cst_182 : f32 to vector<32x128xf32>
    %316 = arith.addf %314, %315 : vector<32x128xf32>
    %317 = arith.mulf %316, %306 : vector<32x128xf32>
    %cst_183 = arith.constant 0.254829586 : f32
    %318 = vector.broadcast %cst_183 : f32 to vector<32x128xf32>
    %319 = arith.addf %317, %318 : vector<32x128xf32>
    %320 = arith.mulf %319, %306 : vector<32x128xf32>
    %cst_184 = arith.constant 0.000000e+00 : f32
    %321 = vector.broadcast %cst_184 : f32 to vector<32x128xf32>
    %322 = arith.subf %321, %300 : vector<32x128xf32>
    %323 = arith.mulf %322, %300 : vector<32x128xf32>
    %324 = math.exp %323 : vector<32x128xf32>
    %325 = arith.mulf %320, %324 : vector<32x128xf32>
    %cst_185 = arith.constant 1.000000e+00 : f32
    %326 = vector.broadcast %cst_185 : f32 to vector<32x128xf32>
    %327 = arith.subf %326, %325 : vector<32x128xf32>
    %328 = arith.mulf %299, %327 : vector<32x128xf32>
    %cst_186 = arith.constant 1.000000e+00 : f32
    %329 = vector.broadcast %cst_186 : f32 to vector<32x128xf32>
    %330 = arith.addf %329, %328 : vector<32x128xf32>
    %331 = arith.mulf %292, %330 : vector<32x128xf32>
    %c1_187 = arith.constant 1 : index
    %c0_188 = arith.constant 0 : index
    %c0_189 = arith.constant 0 : index
    %332 = vector.load %arg18[%c1_187, %c0_188, %c0_189] : memref<2x128x32xf32, #tpu.memory_space<vmem>>, vector<1x128x32xf32>
    %333 = vector.shape_cast %332 : vector<1x128x32xf32> to vector<128x32xf32>
    %cst_190 = arith.constant dense<0.000000e+00> : vector<32x32xf32>
    %334 = tpu.matmul %331, %333, %cst_190 {dimension_numbers = #tpu.dot_dimension_numbers<[1], [0], [0], [1], [0, 0, 1, 1], [], []>} : vector<32x128xf32>, vector<128x32xf32>, vector<32x32xf32> -> vector<32x32xf32>
    %335 = arith.addf %259, %334 : vector<32x32xf32>
    %c1_191 = arith.constant 1 : index
    %c0_192 = arith.constant 0 : index
    %c0_193 = arith.constant 0 : index
    %336 = vector.load %arg19[%c1_191, %c0_192, %c0_193] : memref<2x1x32xf32, #tpu.memory_space<vmem>>, vector<1x1x32xf32>
    %337 = vector.shape_cast %336 : vector<1x1x32xf32> to vector<1x32xf32>
    %338 = vector.broadcast %337 : vector<1x32xf32> to vector<32x32xf32>
    %339 = arith.addf %335, %338 : vector<32x32xf32>
    %340 = tpu.iota {dimensions = array<i32: 0>} : vector<2x32xi32>
    %341 = tpu.iota {dimensions = array<i32: 1>} : vector<2x32xi32>
    %c16_i32_194 = arith.constant 16 : i32
    %342 = vector.broadcast %c16_i32_194 : i32 to vector<2x32xi32>
    %343 = arith.muli %340, %342 : vector<2x32xi32>
    %c8_i32 = arith.constant 8 : i32
    %344 = vector.broadcast %c8_i32 : i32 to vector<2x32xi32>
    %345 = arith.addi %343, %344 : vector<2x32xi32>
    %346 = arith.cmpi eq, %341, %345 : vector<2x32xi32>
    %347 = arith.extui %346 : vector<2x32xi1> to vector<2x32xi32>
    %348 = arith.sitofp %347 : vector<2x32xi32> to vector<2x32xf32>
    %cst_195 = arith.constant dense<0.000000e+00> : vector<2x32xf32>
    %349 = tpu.matmul %348, %339, %cst_195 {dimension_numbers = #tpu.dot_dimension_numbers<[1], [0], [0], [1], [0, 0, 1, 1], [], []>} : vector<2x32xf32>, vector<32x32xf32>, vector<2x32xf32> -> vector<2x32xf32>
    %c0_196 = arith.constant 0 : index
    %c0_197 = arith.constant 0 : index
    %350 = vector.load %arg20[%c0_196, %c0_197] : memref<32x3xf32, #tpu.memory_space<vmem>>, vector<32x3xf32>
    %cst_198 = arith.constant dense<0.000000e+00> : vector<2x3xf32>
    %351 = tpu.matmul %349, %350, %cst_198 {dimension_numbers = #tpu.dot_dimension_numbers<[1], [0], [0], [1], [0, 0, 1, 1], [], []>} : vector<2x32xf32>, vector<32x3xf32>, vector<2x3xf32> -> vector<2x3xf32>
    %c0_199 = arith.constant 0 : index
    %c0_200 = arith.constant 0 : index
    %352 = vector.load %arg2[%c0_199, %c0_200] : memref<2x4xf32, #tpu.memory_space<vmem>>, vector<2x4xf32>
    %c0_201 = arith.constant 0 : index
    %c0_202 = arith.constant 0 : index
    %353 = vector.load %arg21[%c0_201, %c0_202] : memref<4x3xf32, #tpu.memory_space<vmem>>, vector<4x3xf32>
    %cst_203 = arith.constant dense<0.000000e+00> : vector<2x3xf32>
    %354 = tpu.matmul %352, %353, %cst_203 {dimension_numbers = #tpu.dot_dimension_numbers<[1], [0], [0], [1], [0, 0, 1, 1], [], []>} : vector<2x4xf32>, vector<4x3xf32>, vector<2x3xf32> -> vector<2x3xf32>
    %355 = arith.addf %351, %354 : vector<2x3xf32>
    %c0_204 = arith.constant 0 : index
    %c0_205 = arith.constant 0 : index
    %356 = vector.load %arg22[%c0_204, %c0_205] : memref<1x3xf32, #tpu.memory_space<vmem>>, vector<1x3xf32>
    %357 = vector.broadcast %356 : vector<1x3xf32> to vector<2x3xf32>
    %358 = arith.addf %355, %357 : vector<2x3xf32>
    %c0_206 = arith.constant 0 : index
    %c0_207 = arith.constant 0 : index
    %359 = vector.load %arg23[%c0_206, %c0_207] : memref<2x3xf32, #tpu.memory_space<vmem>>, vector<2x3xf32>
    tpu.vector_store %arg23[%c0_206, %c0_207], %358 {strides = array<i32>} : memref<2x3xf32, #tpu.memory_space<vmem>>, vector<2x3xf32>,
    return
  }
  func.func @transform_0(%arg0: i32) -> (i32, i32, i32) {
    %c0_i32 = arith.constant 0 : i32
    %c0_i32_0 = arith.constant 0 : i32
    %c0_i32_1 = arith.constant 0 : i32
    %c0_i32_2 = arith.constant 0 : i32
    return %c0_i32, %c0_i32_0, %c0_i32_1 : i32, i32, i32
  }
  func.func @transform_1(%arg0: i32) -> (i32, i32) {
    %c0_i32 = arith.constant 0 : i32
    %c0_i32_0 = arith.constant 0 : i32
    %c0_i32_1 = arith.constant 0 : i32
    return %c0_i32, %c0_i32_0 : i32, i32
  }
  func.func @transform_2(%arg0: i32) -> (i32, i32, i32) {
    %c0_i32 = arith.constant 0 : i32
    %c0_i32_0 = arith.constant 0 : i32
    %c0_i32_1 = arith.constant 0 : i32
    %c0_i32_2 = arith.constant 0 : i32
    return %c0_i32, %c0_i32_0, %c0_i32_1 : i32, i32, i32
  }
  func.func @transform_3(%arg0: i32) -> (i32, i32, i32) {
    %c0_i32 = arith.constant 0 : i32
    %c0_i32_0 = arith.constant 0 : i32
    %c0_i32_1 = arith.constant 0 : i32
    %c0_i32_2 = arith.constant 0 : i32
    return %c0_i32, %c0_i32_0, %c0_i32_1 : i32, i32, i32
  }
  func.func @transform_4(%arg0: i32) -> (i32, i32, i32) {
    %c0_i32 = arith.constant 0 : i32
    %c0_i32_0 = arith.constant 0 : i32
    %c0_i32_1 = arith.constant 0 : i32
    %c0_i32_2 = arith.constant 0 : i32
    return %c0_i32, %c0_i32_0, %c0_i32_1 : i32, i32, i32
  }
  func.func @transform_5(%arg0: i32) -> (i32, i32, i32) {
    %c0_i32 = arith.constant 0 : i32
    %c0_i32_0 = arith.constant 0 : i32
    %c0_i32_1 = arith.constant 0 : i32
    %c0_i32_2 = arith.constant 0 : i32
    return %c0_i32, %c0_i32_0, %c0_i32_1 : i32, i32, i32
  }
  func.func @transform_6(%arg0: i32) -> (i32, i32, i32) {
    %c0_i32 = arith.constant 0 : i32
    %c0_i32_0 = arith.constant 0 : i32
    %c0_i32_1 = arith.constant 0 : i32
    %c0_i32_2 = arith.constant 0 : i32
    return %c0_i32, %c0_i32_0, %c0_i32_1 : i32, i32, i32
  }
  func.func @transform_7(%arg0: i32) -> (i32, i32, i32) {
    %c0_i32 = arith.constant 0 : i32
    %c0_i32_0 = arith.constant 0 : i32
    %c0_i32_1 = arith.constant 0 : i32
    %c0_i32_2 = arith.constant 0 : i32
    return %c0_i32, %c0_i32_0, %c0_i32_1 : i32, i32, i32
  }
  func.func @transform_8(%arg0: i32) -> (i32, i32, i32) {
    %c0_i32 = arith.constant 0 : i32
    %c0_i32_0 = arith.constant 0 : i32
    %c0_i32_1 = arith.constant 0 : i32
    %c0_i32_2 = arith.constant 0 : i32
    return %c0_i32, %c0_i32_0, %c0_i32_1 : i32, i32, i32
  }
  func.func @transform_9(%arg0: i32) -> (i32, i32, i32) {
    %c0_i32 = arith.constant 0 : i32
    %c0_i32_0 = arith.constant 0 : i32
    %c0_i32_1 = arith.constant 0 : i32
    %c0_i32_2 = arith.constant 0 : i32
    return %c0_i32, %c0_i32_0, %c0_i32_1 : i32, i32, i32
  }
  func.func @transform_10(%arg0: i32) -> (i32, i32, i32) {
    %c0_i32 = arith.constant 0 : i32
    %c0_i32_0 = arith.constant 0 : i32
    %c0_i32_1 = arith.constant 0 : i32
    %c0_i32_2 = arith.constant 0 : i32
    return %c0_i32, %c0_i32_0, %c0_i32_1 : i32, i32, i32
  }
  func.func @transform_11(%arg0: i32) -> (i32, i32, i32) {
    %c0_i32 = arith.constant 0 : i32
    %c0_i32_0 = arith.constant 0 : i32
    %c0_i32_1 = arith.constant 0 : i32
    %c0_i32_2 = arith.constant 0 : i32
    return %c0_i32, %c0_i32_0, %c0_i32_1 : i32, i32, i32
  }
  func.func @transform_12(%arg0: i32) -> (i32, i32, i32) {
    %c0_i32 = arith.constant 0 : i32
    %c0_i32_0 = arith.constant 0 : i32
    %c0_i32_1 = arith.constant 0 : i32
    %c0_i32_2 = arith.constant 0 : i32
    return %c0_i32, %c0_i32_0, %c0_i32_1 : i32, i32, i32
  }
  func.func @transform_13(%arg0: i32) -> (i32, i32, i32) {
    %c0_i32 = arith.constant 0 : i32
    %c0_i32_0 = arith.constant 0 : i32
    %c0_i32_1 = arith.constant 0 : i32
    %c0_i32_2 = arith.constant 0 : i32
    return %c0_i32, %c0_i32_0, %c0_i32_1 : i32, i32, i32
  }
  func.func @transform_14(%arg0: i32) -> (i32, i32, i32) {
    %c0_i32 = arith.constant 0 : i32
    %c0_i32_0 = arith.constant 0 : i32
    %c0_i32_1 = arith.constant 0 : i32
    %c0_i32_2 = arith.constant 0 : i32
    return %c0_i32, %c0_i32_0, %c0_i32_1 : i32, i32, i32
  }
  func.func @transform_15(%arg0: i32) -> (i32, i32, i32) {
    %c0_i32 = arith.constant 0 : i32
    %c0_i32_0 = arith.constant 0 : i32
    %c0_i32_1 = arith.constant 0 : i32
    %c0_i32_2 = arith.constant 0 : i32
    return %c0_i32, %c0_i32_0, %c0_i32_1 : i32, i32, i32
  }
  func.func @transform_16(%arg0: i32) -> (i32, i32, i32) {
    %c0_i32 = arith.constant 0 : i32
    %c0_i32_0 = arith.constant 0 : i32
    %c0_i32_1 = arith.constant 0 : i32
    %c0_i32_2 = arith.constant 0 : i32
    return %c0_i32, %c0_i32_0, %c0_i32_1 : i32, i32, i32
  }
  func.func @transform_17(%arg0: i32) -> (i32, i32, i32) {
    %c0_i32 = arith.constant 0 : i32
    %c0_i32_0 = arith.constant 0 : i32
    %c0_i32_1 = arith.constant 0 : i32
    %c0_i32_2 = arith.constant 0 : i32
    return %c0_i32, %c0_i32_0, %c0_i32_1 : i32, i32, i32
  }
  func.func @transform_18(%arg0: i32) -> (i32, i32, i32) {
    %c0_i32 = arith.constant 0 : i32
    %c0_i32_0 = arith.constant 0 : i32
    %c0_i32_1 = arith.constant 0 : i32
    %c0_i32_2 = arith.constant 0 : i32
    return %c0_i32, %c0_i32_0, %c0_i32_1 : i32, i32, i32
  }
  func.func @transform_19(%arg0: i32) -> (i32, i32) {
    %c0_i32 = arith.constant 0 : i32
    %c0_i32_0 = arith.constant 0 : i32
    %c0_i32_1 = arith.constant 0 : i32
    return %c0_i32, %c0_i32_0 : i32, i32
  }
  func.func @transform_20(%arg0: i32) -> (i32, i32) {
    %c0_i32 = arith.constant 0 : i32
    %c0_i32_0 = arith.constant 0 : i32
    %c0_i32_1 = arith.constant 0 : i32
    return %c0_i32, %c0_i32_0 : i32, i32
  }
  func.func @transform_21(%arg0: i32) -> (i32, i32) {
    %c0_i32 = arith.constant 0 : i32
    %c0_i32_0 = arith.constant 0 : i32
    %c0_i32_1 = arith.constant 0 : i32
    return %c0_i32, %c0_i32_0 : i32, i32
  }
  func.func @transform_22(%arg0: i32) -> (i32, i32) {
    %c0_i32 = arith.constant 0 : i32
    %c0_i32_0 = arith.constant 0 : i32
    %c0_i32_1 = arith.constant 0 : i32
    return %c0_i32, %c0_i32_0 : i32, i32
  }
}

</mosaic_0001>

<llo_original>
// kernel: tpu_custom_call.1
$region0: #{tpu_custom_call.1}
  #allocation0 [shape = 'u32[]', space=smem, size = 0x4, offset = 0x4, fixed_abs, tag = 'smem constant byte address 0x4 - core index']
  #allocation1 [shape = 'u32[72,128]{1,0:T(1,128)}', space=vmem, size = 0x9000, scoped, tag = 'internal scratch']
  #allocation2 [shape = 'f32[32,32]{1,0:T(8,128)}', space=vmem, size = 0x4000, scoped, tag = 'scratch operand']
  %s0 = inlined_call_operand.vmem [shape: f32[2,8,32], index: 0, kind: input, shape index: {}]
  %s1 = inlined_call_operand.vmem [shape: f32[2,4], index: 1, kind: input, shape index: {}]
  %s2 = inlined_call_operand.hbm [shape: f32[1,1,32], index: 2, kind: input, shape index: {}]
  %s3 = inlined_call_operand.vmem [shape: f32[2,1,32], index: 3, kind: input, shape index: {}]
  %s4 = inlined_call_operand.vmem [shape: f32[2,1,32], index: 4, kind: input, shape index: {}]
  %s5 = inlined_call_operand.vmem [shape: f32[2,32,32], index: 5, kind: input, shape index: {}]
  %s6 = inlined_call_operand.vmem [shape: f32[2,1,32], index: 6, kind: input, shape index: {}]
  %s7 = inlined_call_operand.vmem [shape: f32[2,32,32], index: 7, kind: input, shape index: {}]
  %s8 = inlined_call_operand.vmem [shape: f32[2,1,32], index: 8, kind: input, shape index: {}]
  %s9 = inlined_call_operand.vmem [shape: f32[2,32,32], index: 9, kind: input, shape index: {}]
  %s10 = inlined_call_operand.vmem [shape: f32[2,1,32], index: 10, kind: input, shape index: {}]
  %s11 = inlined_call_operand.vmem [shape: f32[2,32,32], index: 11, kind: input, shape index: {}]
  %s12 = inlined_call_operand.vmem [shape: f32[2,1,32], index: 12, kind: input, shape index: {}]
  %s13 = inlined_call_operand.vmem [shape: f32[2,1,32], index: 13, kind: input, shape index: {}]
  %s14 = inlined_call_operand.vmem [shape: f32[2,1,32], index: 14, kind: input, shape index: {}]
  %s15 = inlined_call_operand.vmem [shape: f32[2,32,128], index: 15, kind: input, shape index: {}]
  %s16 = inlined_call_operand.vmem [shape: f32[2,1,128], index: 16, kind: input, shape index: {}]
  %s17 = inlined_call_operand.vmem [shape: f32[2,128,32], index: 17, kind: input, shape index: {}]
  %s18 = inlined_call_operand.vmem [shape: f32[2,1,32], index: 18, kind: input, shape index: {}]
  %s19 = inlined_call_operand.vmem [shape: f32[32,3], index: 19, kind: input, shape index: {}]
  %s20 = inlined_call_operand.vmem [shape: f32[4,3], index: 20, kind: input, shape index: {}]
  %s21 = inlined_call_operand.vmem [shape: f32[1,3], index: 21, kind: input, shape index: {}]
  %s22 = inlined_call_operand.hbm [shape: f32[2,3], index: 22, kind: output, shape index: {}]
  %s23 = sld [smem:[#allocation0]]
  $region102: #{tpu_custom_call.1} parent=0
    _
  %s25 = ssub.s32 1, %s23
  %s26 = scalar_select 0, %s25, %s23
  $region1: #{tpu_custom_call.1} parent=0
    #allocation3 [shape = 'u8[512]{0}', space=vmem, size = 0x400, scoped, tag = 'input window, operand 2, single buffered']
    #allocation4 [shape = 's32[1]{0}', space=sflag, size = 0x4, scoped, tag = 'scoped memory for tpu_custom_call.1']
    #allocation5 [shape = 's32[1]{0}', space=sflag, size = 0x4, scoped, tag = 'scoped memory for tpu_custom_call.1']
    #allocation6 [shape = 'u8[1024]{0}', space=vmem, size = 0x400, scoped, tag = 'output window, operand 0, single buffered']
    %27 = vsyncpa [#allocation4], 0
    %28 = vsyncpa [#allocation5], 0
    // Predicated region
    $region2: #{tpu_custom_call.1} parent=1 // pred_check
      _
    $region3: #{tpu_custom_call.1} parent=1 // pred_check_branch
      %30 = sbr.rel (0) target = $region5
    $region4: #{tpu_custom_call.1} parent=1 // pred_region
      _
    $region5: #{tpu_custom_call.1} parent=1 // pred_fallthru
      _
    // Predicated region
    $region6: #{tpu_custom_call.1} parent=1 // pred_check
      _
    $region7: #{tpu_custom_call.1} parent=1 // pred_check_branch
      %32 = sbr.rel (0) target = $region9
    $region8: #{tpu_custom_call.1} parent=1 // pred_region
      _
    $region9: #{tpu_custom_call.1} parent=1 // pred_fallthru
      _
    // Predicated region
    $region10: #{tpu_custom_call.1} parent=1 // pred_check
      _
    $region11: #{tpu_custom_call.1} parent=1 // pred_check_branch
      %34 = sbr.rel (0) target = $region13
    $region12: #{tpu_custom_call.1} parent=1 // pred_region
      %36 = vsyncadd [#allocation4], 0
      %s38 = sshll.u32 %s2, 4
      %s39 = int_to_ptr.hbm [resolvable:$true] %s38
      %s40 = sshll.u32 [#allocation3], 4
      %s41 = int_to_ptr.vmem [resolvable:$true] %s40
      %43 = dma.hbm_to_vmem [thread:$0]  %s39, 16, %s41, [#allocation4]
    $region13: #{tpu_custom_call.1} parent=1 // pred_fallthru
      _
    // Predicated region
    $region14: #{tpu_custom_call.1} parent=1 // pred_check
      _
    $region15: #{tpu_custom_call.1} parent=1 // pred_check_branch
      %45 = sbr.rel (0) target = $region17
    $region16: #{tpu_custom_call.1} parent=1 // pred_region
      _
    $region17: #{tpu_custom_call.1} parent=1 // pred_fallthru
      _
    // Predicated region
    $region18: #{tpu_custom_call.1} parent=1 // pred_check
      _
    $region19: #{tpu_custom_call.1} parent=1 // pred_check_branch
      %47 = sbr.rel (0) target = $region21
    $region20: #{tpu_custom_call.1} parent=1 // pred_region
      _
    $region21: #{tpu_custom_call.1} parent=1 // pred_fallthru
      _
    // Predicated region
    $region22: #{tpu_custom_call.1} parent=1 // pred_check
      _
    $region23: #{tpu_custom_call.1} parent=1 // pred_check_branch
      %49 = sbr.rel (0) target = $region25
    $region24: #{tpu_custom_call.1} parent=1 // pred_region
      _
    $region25: #{tpu_custom_call.1} parent=1 // pred_fallthru
      _
    // Predicated region
    $region26: #{tpu_custom_call.1} parent=1 // pred_check
      _
    $region27: #{tpu_custom_call.1} parent=1 // pred_check_branch
      %51 = sbr.rel (0) target = $region29
    $region28: #{tpu_custom_call.1} parent=1 // pred_region
      _
    $region29: #{tpu_custom_call.1} parent=1 // pred_fallthru
      _
    // Predicated region
    $region30: #{tpu_custom_call.1} parent=1 // pred_check
      _
    $region31: #{tpu_custom_call.1} parent=1 // pred_check_branch
      %53 = sbr.rel (0) target = $region33
    $region32: #{tpu_custom_call.1} parent=1 // pred_region
      _
    $region33: #{tpu_custom_call.1} parent=1 // pred_fallthru
      _
    // Predicated region
    $region34: #{tpu_custom_call.1} parent=1 // pred_check
      _
    $region35: #{tpu_custom_call.1} parent=1 // pred_check_branch
      %55 = sbr.rel (0) target = $region37
    $region36: #{tpu_custom_call.1} parent=1 // pred_region
      _
    $region37: #{tpu_custom_call.1} parent=1 // pred_fallthru
      _
    // Predicated region
    $region38: #{tpu_custom_call.1} parent=1 // pred_check
      _
    $region39: #{tpu_custom_call.1} parent=1 // pred_check_branch
      %57 = sbr.rel (0) target = $region41
    $region40: #{tpu_custom_call.1} parent=1 // pred_region
      _
    $region41: #{tpu_custom_call.1} parent=1 // pred_fallthru
      _
    // Predicated region
    $region42: #{tpu_custom_call.1} parent=1 // pred_check
      _
    $region43: #{tpu_custom_call.1} parent=1 // pred_check_branch
      %59 = sbr.rel (0) target = $region45
    $region44: #{tpu_custom_call.1} parent=1 // pred_region
      _
    $region45: #{tpu_custom_call.1} parent=1 // pred_fallthru
      _
    // Predicated region
    $region46: #{tpu_custom_call.1} parent=1 // pred_check
      _
    $region47: #{tpu_custom_call.1} parent=1 // pred_check_branch
      %61 = sbr.rel (0) target = $region49
    $region48: #{tpu_custom_call.1} parent=1 // pred_region
      _
    $region49: #{tpu_custom_call.1} parent=1 // pred_fallthru
      _
    // Predicated region
    $region50: #{tpu_custom_call.1} parent=1 // pred_check
      _
    $region51: #{tpu_custom_call.1} parent=1 // pred_check_branch
      %63 = sbr.rel (0) target = $region53
    $region52: #{tpu_custom_call.1} parent=1 // pred_region
      _
    $region53: #{tpu_custom_call.1} parent=1 // pred_fallthru
      _
    // Predicated region
    $region54: #{tpu_custom_call.1} parent=1 // pred_check
      _
    $region55: #{tpu_custom_call.1} parent=1 // pred_check_branch
      %65 = sbr.rel (0) target = $region57
    $region56: #{tpu_custom_call.1} parent=1 // pred_region
      _
    $region57: #{tpu_custom_call.1} parent=1 // pred_fallthru
      _
    // Predicated region
    $region58: #{tpu_custom_call.1} parent=1 // pred_check
      _
    $region59: #{tpu_custom_call.1} parent=1 // pred_check_branch
      %67 = sbr.rel (0) target = $region61
    $region60: #{tpu_custom_call.1} parent=1 // pred_region
      _
    $region61: #{tpu_custom_call.1} parent=1 // pred_fallthru
      _
    // Predicated region
    $region62: #{tpu_custom_call.1} parent=1 // pred_check
      _
    $region63: #{tpu_custom_call.1} parent=1 // pred_check_branch
      %69 = sbr.rel (0) target = $region65
    $region64: #{tpu_custom_call.1} parent=1 // pred_region
      _
    $region65: #{tpu_custom_call.1} parent=1 // pred_fallthru
      _
    // Predicated region
    $region66: #{tpu_custom_call.1} parent=1 // pred_check
      _
    $region67: #{tpu_custom_call.1} parent=1 // pred_check_branch
      %71 = sbr.rel (0) target = $region69
    $region68: #{tpu_custom_call.1} parent=1 // pred_region
      _
    $region69: #{tpu_custom_call.1} parent=1 // pred_fallthru
      _
    // Predicated region
    $region70: #{tpu_custom_call.1} parent=1 // pred_check
      _
    $region71: #{tpu_custom_call.1} parent=1 // pred_check_branch
      %73 = sbr.rel (0) target = $region73
    $region72: #{tpu_custom_call.1} parent=1 // pred_region
      _
    $region73: #{tpu_custom_call.1} parent=1 // pred_fallthru
      _
    // Predicated region
    $region74: #{tpu_custom_call.1} parent=1 // pred_check
      _
    $region75: #{tpu_custom_call.1} parent=1 // pred_check_branch
      %75 = sbr.rel (0) target = $region77
    $region76: #{tpu_custom_call.1} parent=1 // pred_region
      _
    $region77: #{tpu_custom_call.1} parent=1 // pred_fallthru
      _
    // Predicated region
    $region78: #{tpu_custom_call.1} parent=1 // pred_check
      _
    $region79: #{tpu_custom_call.1} parent=1 // pred_check_branch
      %77 = sbr.rel (0) target = $region81
    $region80: #{tpu_custom_call.1} parent=1 // pred_region
      _
    $region81: #{tpu_custom_call.1} parent=1 // pred_fallthru
      _
    // Predicated region
    $region82: #{tpu_custom_call.1} parent=1 // pred_check
      _
    $region83: #{tpu_custom_call.1} parent=1 // pred_check_branch
      %79 = sbr.rel (0) target = $region85
    $region84: #{tpu_custom_call.1} parent=1 // pred_region
      _
    $region85: #{tpu_custom_call.1} parent=1 // pred_fallthru
      _
    // Predicated region
    $region86: #{tpu_custom_call.1} parent=1 // pred_check
      _
    $region87: #{tpu_custom_call.1} parent=1 // pred_check_branch
      %81 = sbr.rel (0) target = $region89
    $region88: #{tpu_custom_call.1} parent=1 // pred_region
      _
    $region89: #{tpu_custom_call.1} parent=1 // pred_fallthru
      _
    // Predicated region
    $region90: #{tpu_custom_call.1} parent=1 // pred_check
      _
    $region91: #{tpu_custom_call.1} parent=1 // pred_check_branch
      %83 = sbr.rel (0) target = $region93
    $region92: #{tpu_custom_call.1} parent=1 // pred_region
      %85 = dma.done [#allocation4], 16
    $region93: #{tpu_custom_call.1} parent=1 // pred_fallthru
      _
    %vm86 = vcmask 261120
    %87 = vst.msk [vmem:[#allocation2] sm:$0xff] %vm86, 0.0
    %88 = vst.msk [vmem:[#allocation2 + $0x8] sm:$0xff] %vm86, 0.0
    %89 = vst.msk [vmem:[#allocation2 + $0x10] sm:$0xff] %vm86, 0.0
    %90 = vst.msk [vmem:[#allocation2 + $0x18] sm:$0xff] %vm86, 0.0
    %v91 = vld [vmem:[%s0] sm:$0xff]
    %92 = vst.msk [vmem:[#allocation2] sm:$0xff] %vm86, %v91
    %v93 = vld [vmem:[#allocation3] sm:$0x1]
    %vm94 = vcmask 253952
    %95 = vst.msk [vmem:[#allocation2 + $0x8] sm:$0x1] %vm94, %v93
    %s96 = scalar_lea.vmem %s0, 8
    %v97 = vld [vmem:[%s96] sm:$0xff]
    %98 = vst.msk [vmem:[#allocation2 + $0x10] sm:$0xff] %vm86, %v97
    %v99 = vld [vmem:[#allocation3] sm:$0x1]
    %100 = vst.msk [vmem:[#allocation2 + $0x18] sm:$0x1] %vm94, %v99
    %v101 = vld [vmem:[#allocation2] sm:$0xff]
    %v102 = vld [vmem:[#allocation2 + $0x8] sm:$0xff]
    %v103 = vld [vmem:[#allocation2 + $0x10] sm:$0xff]
    %v104 = vld [vmem:[#allocation2 + $0x18] sm:$0xff]
    %v105 = vlaneseq
    %v106 = vshrl.u32 %v105, 7
    %v107 = vadd.s32 %v106, 8
    %v108 = vadd.s32 %v106, 16
    %v109 = vadd.s32 %v106, 24
    %v110 = vlaneseq
    %v111 = vand.u32 %v110, 127
    %vm112 = vcmp.ge.s32.totalorder %v106, 0
    %vm113 = vcmp.ge.s32.totalorder %v107, 0
    %vm114 = vcmp.ge.s32.totalorder %v108, 0
    %vm115 = vcmp.ge.s32.totalorder %v109, 0
    %vm116 = vcmp.lt.s32.totalorder %v106, 16
    %vm117 = vcmp.lt.s32.totalorder %v107, 16
    %vm118 = vcmp.lt.s32.totalorder %v108, 16
    %vm119 = vcmp.lt.s32.totalorder %v109, 16
    %vm120 = vmand %vm112, %vm116
    %vm121 = vmand %vm113, %vm117
    %vm122 = vmand %vm114, %vm118
    %vm123 = vmand %vm115, %vm119
    %vm124 = vcmp.ge.s32.totalorder %v111, 0
    %vm125 = vcmp.lt.s32.totalorder %v111, 9
    %vm126 = vmand %vm124, %vm125
    %vm127 = vmand %vm120, %vm126
    %vm128 = vmand %vm121, %vm126
    %vm129 = vmand %vm122, %vm126
    %vm130 = vmand %vm123, %vm126
    %vm131 = vcmp.ge.s32.totalorder %v106, 16
    %vm132 = vcmp.ge.s32.totalorder %v107, 16
    %vm133 = vcmp.ge.s32.totalorder %v108, 16
    %vm134 = vcmp.ge.s32.totalorder %v109, 16
    %vm135 = vcmp.lt.s32.totalorder %v106, 32
    %vm136 = vcmp.lt.s32.totalorder %v107, 32
    %vm137 = vcmp.lt.s32.totalorder %v108, 32
    %vm138 = vcmp.lt.s32.totalorder %v109, 32
    %vm139 = vmand %vm131, %vm135
    %vm140 = vmand %vm132, %vm136
    %vm141 = vmand %vm133, %vm137
    %vm142 = vmand %vm134, %vm138
    %vm143 = vcmp.ge.s32.totalorder %v111, 16
    %vm144 = vcmp.lt.s32.totalorder %v111, 25
    %vm145 = vmand %vm143, %vm144
    %vm146 = vmand %vm139, %vm145
    %vm147 = vmand %vm140, %vm145
    %vm148 = vmand %vm141, %vm145
    %vm149 = vmand %vm142, %vm145
    %vm150 = vmor %vm127, %vm146
    %vm151 = vmor %vm128, %vm147
    %vm152 = vmor %vm129, %vm148
    %vm153 = vmor %vm130, %vm149
    %v154 = vld [vmem:[%s3] sm:$0x1]
    %v155 = vld [vmem:[%s4] sm:$0x1]
    %v156 = vsel %vm86, %v101, 0.0
    %157 = vadd.xlane.f32.xlu0 %v156
    %v158 = vpop.xlane.xlu0 %157
    %v159 = vsel %vm86, %v102, 0.0
    %160 = vadd.xlane.f32.xlu0 %v159
    %v161 = vpop.xlane.xlu0 %160
    %v162 = vsel %vm86, %v103, 0.0
    %163 = vadd.xlane.f32.xlu0 %v162
    %v164 = vpop.xlane.xlu0 %163
    %v165 = vsel %vm86, %v104, 0.0
    %166 = vadd.xlane.f32.xlu0 %v165
    %v167 = vpop.xlane.xlu0 %166
    %v168 = vrcp.pop 32.0
    %v169 = vmul.f32 32.0, %v168
    %v170 = vsub.f32 1.0, %v169
    %v171 = vmul.f32 %v168, %v170
    %v172 = vadd.f32 %v168, %v171
    %vm173 = vweird.f32 %v168
    %v174 = vsel %vm173, %v168, %v172
    %v175 = vmul.f32 %v158, %v174
    %v176 = vmul.f32 %v161, %v174
    %v177 = vmul.f32 %v164, %v174
    %v178 = vmul.f32 %v167, %v174
    %v179 = vsub.f32 %v101, %v175
    %v180 = vsub.f32 %v102, %v176
    %v181 = vsub.f32 %v103, %v177
    %v182 = vsub.f32 %v104, %v178
    %v183 = vmul.f32 %v179, %v179
    %v184 = vmul.f32 %v180, %v180
    %v185 = vmul.f32 %v181, %v181
    %v186 = vmul.f32 %v182, %v182
    %v187 = vsel %vm86, %v183, 0.0
    %188 = vadd.xlane.f32.xlu0 %v187
    %v189 = vpop.xlane.xlu0 %188
    %v190 = vsel %vm86, %v184, 0.0
    %191 = vadd.xlane.f32.xlu0 %v190
    %v192 = vpop.xlane.xlu0 %191
    %v193 = vsel %vm86, %v185, 0.0
    %194 = vadd.xlane.f32.xlu0 %v193
    %v195 = vpop.xlane.xlu0 %194
    %v196 = vsel %vm86, %v186, 0.0
    %197 = vadd.xlane.f32.xlu0 %v196
    %v198 = vpop.xlane.xlu0 %197
    %v199 = vmul.f32 %v189, %v174
    %v200 = vmul.f32 %v192, %v174
    %v201 = vmul.f32 %v195, %v174
    %v202 = vmul.f32 %v198, %v174
    %v203 = vadd.f32 %v199, 1e-05
    %v204 = vadd.f32 %v200, 1e-05
    %v205 = vadd.f32 %v201, 1e-05
    %v206 = vadd.f32 %v202, 1e-05
    %v207 = vrsqrt.pop %v203
    %v208 = vmul.f32 %v207, %v203
    %v209 = vmul.f32 %v208, %v207
    %v210 = vmul.f32 0.5, %v209
    %v211 = vsub.f32 1.5, %v210
    %v212 = vmul.f32 %v207, %v211
    %vm213 = vweird.f32 %v203
    %vm214 = vweird.f32 %v207
    %vm215 = vmor %vm213, %vm214
    %v216 = vsel %vm215, %v207, %v212
    %v217 = vrsqrt.pop %v204
    %v218 = vmul.f32 %v217, %v204
    %v219 = vmul.f32 %v218, %v217
    %v220 = vmul.f32 0.5, %v219
    %v221 = vsub.f32 1.5, %v220
    %v222 = vmul.f32 %v217, %v221
    %vm223 = vweird.f32 %v204
    %vm224 = vweird.f32 %v217
    %vm225 = vmor %vm223, %vm224
    %v226 = vsel %vm225, %v217, %v222
    %v227 = vrsqrt.pop %v205
    %v228 = vmul.f32 %v227, %v205
    %v229 = vmul.f32 %v228, %v227
    %v230 = vmul.f32 0.5, %v229
    %v231 = vsub.f32 1.5, %v230
    %v232 = vmul.f32 %v227, %v231
    %vm233 = vweird.f32 %v205
    %vm234 = vweird.f32 %v227
    %vm235 = vmor %vm233, %vm234
    %v236 = vsel %vm235, %v227, %v232
    %v237 = vrsqrt.pop %v206
    %v238 = vmul.f32 %v237, %v206
    %v239 = vmul.f32 %v238, %v237
    %v240 = vmul.f32 0.5, %v239
    %v241 = vsub.f32 1.5, %v240
    %v242 = vmul.f32 %v237, %v241
    %vm243 = vweird.f32 %v206
    %vm244 = vweird.f32 %v237
    %vm245 = vmor %vm243, %vm244
    %v246 = vsel %vm245, %v237, %v242
    %v247 = vmul.f32 %v179, %v216
    %v248 = vmul.f32 %v180, %v226
    %v249 = vmul.f32 %v181, %v236
    %v250 = vmul.f32 %v182, %v246
    %v252 = vperm.slane %v154, 0
    %v254 = vmul.f32 %v247, %v252
    %v255 = vmul.f32 %v248, %v252
    %v256 = vmul.f32 %v249, %v252
    %v257 = vmul.f32 %v250, %v252
    %v259 = vperm.slane %v155, 0
    %v261 = vadd.f32 %v254, %v259
    %v262 = vadd.f32 %v255, %v259
    %v263 = vadd.f32 %v256, %v259
    %v264 = vadd.f32 %v257, %v259
    %v265 = vld [vmem:[%s5] sm:$0xff]
    %v266 = vld [vmem:[%s5 + $0x8] sm:$0xff]
    %v267 = vld [vmem:[%s5 + $0x10] sm:$0xff]
    %v268 = vld [vmem:[%s5 + $0x18] sm:$0xff]
    %v269 = vld [vmem:[%s6] sm:$0x1]
    %v271 = vperm.slane %v269, 0
    %v274 = vsel %vm86, %v261, 0
    %v277 = vsel %vm86, %v262, 0
    %v280 = vsel %vm86, %v263, 0
    %v283 = vsel %vm86, %v264, 0
    %285 = vmatpush.msra.mxu0 0.0
    %286 = vmatpush.msra.mxu0 0.0
    %287 = vmatpush.msra.mxu0 0.0
    %288 = vmatpush.msra.mxu0 0.0
    %289 = vmatpush.msra.mxu0 0.0
    %290 = vmatpush.msra.mxu0 0.0
    %291 = vmatpush.msra.mxu0 0.0
    %292 = vmatpush.msra.mxu0 0.0
    %293 = vmatpush.msra.mxu0 0.0
    %294 = vmatpush.msra.mxu0 0.0
    %295 = vmatpush.msra.mxu0 0.0
    %296 = vmatpush.msra.mxu0 0.0
    %297 = vmatpush.msra.mxu0 %v268
    %298 = vmatpush.msra.mxu0 %v267
    %299 = vmatpush.msra.mxu0 %v266
    %300 = vmatpush.msra.mxu0 %v265
    %301 = vmatmul.f32.gmra.mxu0 %v274
    %v302 = vpop.f32.mrf.mxu0
    %v303 = vadd.f32 %v271, %v302
    %304 = vmatmul.f32.gmra.mxu0 %v277
    %v305 = vpop.f32.mrf.mxu0
    %v306 = vadd.f32 %v271, %v305
    %307 = vmatmul.f32.gmra.mxu0 %v280
    %v308 = vpop.f32.mrf.mxu0
    %v309 = vadd.f32 %v271, %v308
    %310 = vmatmul.f32.gmra.mxu0 %v283
    %v311 = vpop.f32.mrf.mxu0
    %v312 = vadd.f32 %v271, %v311
    %313 = vdwg.mxu0
    %v314 = vld [vmem:[%s7] sm:$0xff]
    %v315 = vld [vmem:[%s7 + $0x8] sm:$0xff]
    %v316 = vld [vmem:[%s7 + $0x10] sm:$0xff]
    %v317 = vld [vmem:[%s7 + $0x18] sm:$0xff]
    %v318 = vld [vmem:[%s8] sm:$0x1]
    %v320 = vperm.slane %v318, 0
    %322 = vmatpush.msra.mxu0 0.0
    %323 = vmatpush.msra.mxu0 0.0
    %324 = vmatpush.msra.mxu0 0.0
    %325 = vmatpush.msra.mxu0 0.0
    %326 = vmatpush.msra.mxu0 0.0
    %327 = vmatpush.msra.mxu0 0.0
    %328 = vmatpush.msra.mxu0 0.0
    %329 = vmatpush.msra.mxu0 0.0
    %330 = vmatpush.msra.mxu0 0.0
    %331 = vmatpush.msra.mxu0 0.0
    %332 = vmatpush.msra.mxu0 0.0
    %333 = vmatpush.msra.mxu0 0.0
    %334 = vmatpush.msra.mxu0 %v317
    %335 = vmatpush.msra.mxu0 %v316
    %336 = vmatpush.msra.mxu0 %v315
    %337 = vmatpush.msra.mxu0 %v314
    %338 = vmatmul.f32.gmra.mxu0 %v274
    %v339 = vpop.f32.mrf.mxu0
    %v340 = vadd.f32 %v320, %v339
    %341 = vmatmul.f32.gmra.mxu0 %v277
    %v342 = vpop.f32.mrf.mxu0
    %v343 = vadd.f32 %v320, %v342
    %344 = vmatmul.f32.gmra.mxu0 %v280
    %v345 = vpop.f32.mrf.mxu0
    %v346 = vadd.f32 %v320, %v345
    %347 = vmatmul.f32.gmra.mxu0 %v283
    %v348 = vpop.f32.mrf.mxu0
    %v349 = vadd.f32 %v320, %v348
    %350 = vdwg.mxu0
    %v351 = vld [vmem:[%s9] sm:$0xff]
    %v352 = vld [vmem:[%s9 + $0x8] sm:$0xff]
    %v353 = vld [vmem:[%s9 + $0x10] sm:$0xff]
    %v354 = vld [vmem:[%s9 + $0x18] sm:$0xff]
    %v355 = vld [vmem:[%s10] sm:$0x1]
    %v357 = vperm.slane %v355, 0
    %359 = vmatpush.msra.mxu0 0.0
    %360 = vmatpush.msra.mxu0 0.0
    %361 = vmatpush.msra.mxu0 0.0
    %362 = vmatpush.msra.mxu0 0.0
    %363 = vmatpush.msra.mxu0 0.0
    %364 = vmatpush.msra.mxu0 0.0
    %365 = vmatpush.msra.mxu0 0.0
    %366 = vmatpush.msra.mxu0 0.0
    %367 = vmatpush.msra.mxu0 0.0
    %368 = vmatpush.msra.mxu0 0.0
    %369 = vmatpush.msra.mxu0 0.0
    %370 = vmatpush.msra.mxu0 0.0
    %371 = vmatpush.msra.mxu0 %v354
    %372 = vmatpush.msra.mxu0 %v353
    %373 = vmatpush.msra.mxu0 %v352
    %374 = vmatpush.msra.mxu0 %v351
    %375 = vmatmul.f32.gmra.mxu0 %v274
    %v376 = vpop.f32.mrf.mxu0
    %v377 = vadd.f32 %v357, %v376
    %378 = vmatmul.f32.gmra.mxu0 %v277
    %v379 = vpop.f32.mrf.mxu0
    %v380 = vadd.f32 %v357, %v379
    %381 = vmatmul.f32.gmra.mxu0 %v280
    %v382 = vpop.f32.mrf.mxu0
    %v383 = vadd.f32 %v357, %v382
    %384 = vmatmul.f32.gmra.mxu0 %v283
    %v385 = vpop.f32.mrf.mxu0
    %v386 = vadd.f32 %v357, %v385
    %387 = vdwg.mxu0
    %v389 = vsel %vm86, %v303, 0
    %v392 = vsel %vm86, %v306, 0
    %v395 = vsel %vm86, %v309, 0
    %v398 = vsel %vm86, %v312, 0
    %v401 = vsel %vm86, %v340, 0
    %v404 = vsel %vm86, %v343, 0
    %v407 = vsel %vm86, %v346, 0
    %v410 = vsel %vm86, %v349, 0
    %412 = vmatpush.xpose.msra.mxu0 0.0
    %413 = vmatpush.xpose.msra.mxu0 0.0
    %414 = vmatpush.xpose.msra.mxu0 0.0
    %415 = vmatpush.xpose.msra.mxu0 0.0
    %416 = vmatpush.xpose.msra.mxu0 0.0
    %417 = vmatpush.xpose.msra.mxu0 0.0
    %418 = vmatpush.xpose.msra.mxu0 0.0
    %419 = vmatpush.xpose.msra.mxu0 0.0
    %420 = vmatpush.xpose.msra.mxu0 0.0
    %421 = vmatpush.xpose.msra.mxu0 0.0
    %422 = vmatpush.xpose.msra.mxu0 0.0
    %423 = vmatpush.xpose.msra.mxu0 0.0
    %424 = vmatpush.xpose.msra.mxu0 %v410
    %425 = vmatpush.xpose.msra.mxu0 %v407
    %426 = vmatpush.xpose.msra.mxu0 %v404
    %427 = vmatpush.xpose.msra.mxu0 %v401
    %428 = vmatmul.f32.gmra.mxu0 %v389
    %v429 = vpop.f32.mrf.mxu0
    %v430 = vadd.f32 0.0, %v429
    %431 = vmatmul.f32.gmra.mxu0 %v392
    %v432 = vpop.f32.mrf.mxu0
    %v433 = vadd.f32 0.0, %v432
    %434 = vmatmul.f32.gmra.mxu0 %v395
    %v435 = vpop.f32.mrf.mxu0
    %v436 = vadd.f32 0.0, %v435
    %437 = vmatmul.f32.gmra.mxu0 %v398
    %v438 = vpop.f32.mrf.mxu0
    %v439 = vadd.f32 0.0, %v438
    %440 = vdwg.mxu0
    %v441 = vmul.f32 %v430, 0.17677669
    %v442 = vmul.f32 %v433, 0.17677669
    %v443 = vmul.f32 %v436, 0.17677669
    %v444 = vmul.f32 %v439, 0.17677669
    %v445 = vsel %vm150, %v441, -1e+30
    %v446 = vsel %vm151, %v442, -1e+30
    %v447 = vsel %vm152, %v443, -1e+30
    %v448 = vsel %vm153, %v444, -1e+30
    %v449 = vsel %vm86, %v445, -inf
    %450 = vmax.xlane.f32.xlu0 %v449
    %v451 = vpop.xlane.xlu0 %450
    %v452 = vsel %vm86, %v446, -inf
    %453 = vmax.xlane.f32.xlu0 %v452
    %v454 = vpop.xlane.xlu0 %453
    %v455 = vsel %vm86, %v447, -inf
    %456 = vmax.xlane.f32.xlu0 %v455
    %v457 = vpop.xlane.xlu0 %456
    %v458 = vsel %vm86, %v448, -inf
    %459 = vmax.xlane.f32.xlu0 %v458
    %v460 = vpop.xlane.xlu0 %459
    %v461 = vsub.f32 %v445, %v451
    %v462 = vsub.f32 %v446, %v454
    %v463 = vsub.f32 %v447, %v457
    %v464 = vsub.f32 %v448, %v460
    %v465 = vmul.f32 %v461, 1.442695
    %v466 = vpow.pop %v465
    %v467 = vmul.f32 %v462, 1.442695
    %v468 = vpow.pop %v467
    %v469 = vmul.f32 %v463, 1.442695
    %v470 = vpow.pop %v469
    %v471 = vmul.f32 %v464, 1.442695
    %v472 = vpow.pop %v471
    %v473 = vsel %vm86, %v466, 0.0
    %474 = vadd.xlane.f32.xlu0 %v473
    %v475 = vpop.xlane.xlu0 %474
    %v476 = vsel %vm86, %v468, 0.0
    %477 = vadd.xlane.f32.xlu0 %v476
    %v478 = vpop.xlane.xlu0 %477
    %v479 = vsel %vm86, %v470, 0.0
    %480 = vadd.xlane.f32.xlu0 %v479
    %v481 = vpop.xlane.xlu0 %480
    %v482 = vsel %vm86, %v472, 0.0
    %483 = vadd.xlane.f32.xlu0 %v482
    %v484 = vpop.xlane.xlu0 %483
    %v485 = vrcp.pop %v475
    %v486 = vrcp.pop %v478
    %v487 = vrcp.pop %v481
    %v488 = vrcp.pop %v484
    %v489 = vmul.f32 %v466, %v485
    %v490 = vmul.f32 %v468, %v486
    %v491 = vmul.f32 %v470, %v487
    %v492 = vmul.f32 %v472, %v488
    %v494 = vsel %vm86, %v489, 0
    %v497 = vsel %vm86, %v490, 0
    %v500 = vsel %vm86, %v491, 0
    %v503 = vsel %vm86, %v492, 0
    %505 = vmatpush.msra.mxu0 0.0
    %506 = vmatpush.msra.mxu0 0.0
    %507 = vmatpush.msra.mxu0 0.0
    %508 = vmatpush.msra.mxu0 0.0
    %509 = vmatpush.msra.mxu0 0.0
    %510 = vmatpush.msra.mxu0 0.0
    %511 = vmatpush.msra.mxu0 0.0
    %512 = vmatpush.msra.mxu0 0.0
    %513 = vmatpush.msra.mxu0 0.0
    %514 = vmatpush.msra.mxu0 0.0
    %515 = vmatpush.msra.mxu0 0.0
    %516 = vmatpush.msra.mxu0 0.0
    %517 = vmatpush.msra.mxu0 %v386
    %518 = vmatpush.msra.mxu0 %v383
    %519 = vmatpush.msra.mxu0 %v380
    %520 = vmatpush.msra.mxu0 %v377
    %521 = vmatmul.f32.gmra.mxu0 %v494
    %v522 = vpop.f32.mrf.mxu0
    %v523 = vadd.f32 0.0, %v522
    %524 = vmatmul.f32.gmra.mxu0 %v497
    %v525 = vpop.f32.mrf.mxu0
    %v526 = vadd.f32 0.0, %v525
    %527 = vmatmul.f32.gmra.mxu0 %v500
    %v528 = vpop.f32.mrf.mxu0
    %v529 = vadd.f32 0.0, %v528
    %530 = vmatmul.f32.gmra.mxu0 %v503
    %v531 = vpop.f32.mrf.mxu0
    %v532 = vadd.f32 0.0, %v531
    %533 = vdwg.mxu0
    %v534 = vld [vmem:[%s11] sm:$0xff]
    %v535 = vld [vmem:[%s11 + $0x8] sm:$0xff]
    %v536 = vld [vmem:[%s11 + $0x10] sm:$0xff]
    %v537 = vld [vmem:[%s11 + $0x18] sm:$0xff]
    %v539 = vsel %vm86, %v523, 0
    %v542 = vsel %vm86, %v526, 0
    %v545 = vsel %vm86, %v529, 0
    %v548 = vsel %vm86, %v532, 0
    %550 = vmatpush.msra.mxu0 0.0
    %551 = vmatpush.msra.mxu0 0.0
    %552 = vmatpush.msra.mxu0 0.0
    %553 = vmatpush.msra.mxu0 0.0
    %554 = vmatpush.msra.mxu0 0.0
    %555 = vmatpush.msra.mxu0 0.0
    %556 = vmatpush.msra.mxu0 0.0
    %557 = vmatpush.msra.mxu0 0.0
    %558 = vmatpush.msra.mxu0 0.0
    %559 = vmatpush.msra.mxu0 0.0
    %560 = vmatpush.msra.mxu0 0.0
    %561 = vmatpush.msra.mxu0 0.0
    %562 = vmatpush.msra.mxu0 %v537
    %563 = vmatpush.msra.mxu0 %v536
    %564 = vmatpush.msra.mxu0 %v535
    %565 = vmatpush.msra.mxu0 %v534
    %566 = vmatmul.f32.gmra.mxu0 %v539
    %v567 = vpop.f32.mrf.mxu0
    %v568 = vadd.f32 0.0, %v567
    %569 = vmatmul.f32.gmra.mxu0 %v542
    %v570 = vpop.f32.mrf.mxu0
    %v571 = vadd.f32 0.0, %v570
    %572 = vmatmul.f32.gmra.mxu0 %v545
    %v573 = vpop.f32.mrf.mxu0
    %v574 = vadd.f32 0.0, %v573
    %575 = vmatmul.f32.gmra.mxu0 %v548
    %v576 = vpop.f32.mrf.mxu0
    %v577 = vadd.f32 0.0, %v576
    %578 = vdwg.mxu0
    %v579 = vadd.f32 %v101, %v568
    %v580 = vadd.f32 %v102, %v571
    %v581 = vadd.f32 %v103, %v574
    %v582 = vadd.f32 %v104, %v577
    %v583 = vld [vmem:[%s12] sm:$0x1]
    %v585 = vperm.slane %v583, 0
    %v587 = vadd.f32 %v579, %v585
    %v588 = vadd.f32 %v580, %v585
    %v589 = vadd.f32 %v581, %v585
    %v590 = vadd.f32 %v582, %v585
    %v591 = vld [vmem:[%s13] sm:$0x1]
    %v592 = vld [vmem:[%s14] sm:$0x1]
    %v593 = vsel %vm86, %v587, 0.0
    %594 = vadd.xlane.f32.xlu0 %v593
    %v595 = vpop.xlane.xlu0 %594
    %v596 = vsel %vm86, %v588, 0.0
    %597 = vadd.xlane.f32.xlu0 %v596
    %v598 = vpop.xlane.xlu0 %597
    %v599 = vsel %vm86, %v589, 0.0
    %600 = vadd.xlane.f32.xlu0 %v599
    %v601 = vpop.xlane.xlu0 %600
    %v602 = vsel %vm86, %v590, 0.0
    %603 = vadd.xlane.f32.xlu0 %v602
    %v604 = vpop.xlane.xlu0 %603
    %v605 = vmul.f32 %v595, %v174
    %v606 = vmul.f32 %v598, %v174
    %v607 = vmul.f32 %v601, %v174
    %v608 = vmul.f32 %v604, %v174
    %v609 = vsub.f32 %v587, %v605
    %v610 = vsub.f32 %v588, %v606
    %v611 = vsub.f32 %v589, %v607
    %v612 = vsub.f32 %v590, %v608
    %v613 = vmul.f32 %v609, %v609
    %v614 = vmul.f32 %v610, %v610
    %v615 = vmul.f32 %v611, %v611
    %v616 = vmul.f32 %v612, %v612
    %v617 = vsel %vm86, %v613, 0.0
    %618 = vadd.xlane.f32.xlu0 %v617
    %v619 = vpop.xlane.xlu0 %618
    %v620 = vsel %vm86, %v614, 0.0
    %621 = vadd.xlane.f32.xlu0 %v620
    %v622 = vpop.xlane.xlu0 %621
    %v623 = vsel %vm86, %v615, 0.0
    %624 = vadd.xlane.f32.xlu0 %v623
    %v625 = vpop.xlane.xlu0 %624
    %v626 = vsel %vm86, %v616, 0.0
    %627 = vadd.xlane.f32.xlu0 %v626
    %v628 = vpop.xlane.xlu0 %627
    %v629 = vmul.f32 %v619, %v174
    %v630 = vmul.f32 %v622, %v174
    %v631 = vmul.f32 %v625, %v174
    %v632 = vmul.f32 %v628, %v174
    %v633 = vadd.f32 %v629, 1e-05
    %v634 = vadd.f32 %v630, 1e-05
    %v635 = vadd.f32 %v631, 1e-05
    %v636 = vadd.f32 %v632, 1e-05
    %v637 = vrsqrt.pop %v633
    %v638 = vmul.f32 %v637, %v633
    %v639 = vmul.f32 %v638, %v637
    %v640 = vmul.f32 0.5, %v639
    %v641 = vsub.f32 1.5, %v640
    %v642 = vmul.f32 %v637, %v641
    %vm643 = vweird.f32 %v633
    %vm644 = vweird.f32 %v637
    %vm645 = vmor %vm643, %vm644
    %v646 = vsel %vm645, %v637, %v642
    %v647 = vrsqrt.pop %v634
    %v648 = vmul.f32 %v647, %v634
    %v649 = vmul.f32 %v648, %v647
    %v650 = vmul.f32 0.5, %v649
    %v651 = vsub.f32 1.5, %v650
    %v652 = vmul.f32 %v647, %v651
    %vm653 = vweird.f32 %v634
    %vm654 = vweird.f32 %v647
    %vm655 = vmor %vm653, %vm654
    %v656 = vsel %vm655, %v647, %v652
    %v657 = vrsqrt.pop %v635
    %v658 = vmul.f32 %v657, %v635
    %v659 = vmul.f32 %v658, %v657
    %v660 = vmul.f32 0.5, %v659
    %v661 = vsub.f32 1.5, %v660
    %v662 = vmul.f32 %v657, %v661
    %vm663 = vweird.f32 %v635
    %vm664 = vweird.f32 %v657
    %vm665 = vmor %vm663, %vm664
    %v666 = vsel %vm665, %v657, %v662
    %v667 = vrsqrt.pop %v636
    %v668 = vmul.f32 %v667, %v636
    %v669 = vmul.f32 %v668, %v667
    %v670 = vmul.f32 0.5, %v669
    %v671 = vsub.f32 1.5, %v670
    %v672 = vmul.f32 %v667, %v671
    %vm673 = vweird.f32 %v636
    %vm674 = vweird.f32 %v667
    %vm675 = vmor %vm673, %vm674
    %v676 = vsel %vm675, %v667, %v672
    %v677 = vmul.f32 %v609, %v646
    %v678 = vmul.f32 %v610, %v656
    %v679 = vmul.f32 %v611, %v666
    %v680 = vmul.f32 %v612, %v676
    %v682 = vperm.slane %v591, 0
    %v684 = vmul.f32 %v677, %v682
    %v685 = vmul.f32 %v678, %v682
    %v686 = vmul.f32 %v679, %v682
    %v687 = vmul.f32 %v680, %v682
    %v689 = vperm.slane %v592, 0
    %v691 = vadd.f32 %v684, %v689
    %v692 = vadd.f32 %v685, %v689
    %v693 = vadd.f32 %v686, %v689
    %v694 = vadd.f32 %v687, %v689
    %v695 = vld [vmem:[%s15] sm:$0xff]
    %v696 = vld [vmem:[%s15 + $0x8] sm:$0xff]
    %v697 = vld [vmem:[%s15 + $0x10] sm:$0xff]
    %v698 = vld [vmem:[%s15 + $0x18] sm:$0xff]
    %v699 = vld [vmem:[%s16] sm:$0x1]
    %v701 = vperm.slane %v699, 0
    %v704 = vsel %vm86, %v691, 0
    %v707 = vsel %vm86, %v692, 0
    %v710 = vsel %vm86, %v693, 0
    %v713 = vsel %vm86, %v694, 0
    %715 = vmatpush.msra.mxu0 0.0
    %716 = vmatpush.msra.mxu0 0.0
    %717 = vmatpush.msra.mxu0 0.0
    %718 = vmatpush.msra.mxu0 0.0
    %719 = vmatpush.msra.mxu0 0.0
    %720 = vmatpush.msra.mxu0 0.0
    %721 = vmatpush.msra.mxu0 0.0
    %722 = vmatpush.msra.mxu0 0.0
    %723 = vmatpush.msra.mxu0 0.0
    %724 = vmatpush.msra.mxu0 0.0
    %725 = vmatpush.msra.mxu0 0.0
    %726 = vmatpush.msra.mxu0 0.0
    %727 = vmatpush.msra.mxu0 %v698
    %728 = vmatpush.msra.mxu0 %v697
    %729 = vmatpush.msra.mxu0 %v696
    %730 = vmatpush.msra.mxu0 %v695
    %731 = vmatmul.f32.gmra.mxu0 %v704
    %v732 = vpop.f32.mrf.mxu0
    %v733 = vadd.f32 %v701, %v732
    %734 = vmatmul.f32.gmra.mxu0 %v707
    %v735 = vpop.f32.mrf.mxu0
    %v736 = vadd.f32 %v701, %v735
    %737 = vmatmul.f32.gmra.mxu0 %v710
    %v738 = vpop.f32.mrf.mxu0
    %v739 = vadd.f32 %v701, %v738
    %740 = vmatmul.f32.gmra.mxu0 %v713
    %v741 = vpop.f32.mrf.mxu0
    %v742 = vadd.f32 %v701, %v741
    %743 = vdwg.mxu0
    %v744 = vmul.f32 %v733, 0.5
    %v745 = vmul.f32 %v736, 0.5
    %v746 = vmul.f32 %v739, 0.5
    %v747 = vmul.f32 %v742, 0.5
    %v748 = vmul.f32 %v733, 0.70710677
    %v749 = vmul.f32 %v736, 0.70710677
    %v750 = vmul.f32 %v739, 0.70710677
    %v751 = vmul.f32 %v742, 0.70710677
    %vm752 = vcmp.ge.f32.partialorder %v748, 0.0
    %vm753 = vcmp.ge.f32.partialorder %v749, 0.0
    %vm754 = vcmp.ge.f32.partialorder %v750, 0.0
    %vm755 = vcmp.ge.f32.partialorder %v751, 0.0
    %v756 = vsel %vm752, 1.0, -1.0
    %v757 = vsel %vm753, 1.0, -1.0
    %v758 = vsel %vm754, 1.0, -1.0
    %v759 = vsel %vm755, 1.0, -1.0
    %v760 = vmul.f32 %v748, %v756
    %v761 = vmul.f32 %v749, %v757
    %v762 = vmul.f32 %v750, %v758
    %v763 = vmul.f32 %v751, %v759
    %v764 = vmul.f32 %v760, 0.3275911
    %v765 = vmul.f32 %v761, 0.3275911
    %v766 = vmul.f32 %v762, 0.3275911
    %v767 = vmul.f32 %v763, 0.3275911
    %v768 = vadd.f32 %v764, 1.0
    %v769 = vadd.f32 %v765, 1.0
    %v770 = vadd.f32 %v766, 1.0
    %v771 = vadd.f32 %v767, 1.0
    %v772 = vrcp.pop %v768
    %v773 = vmul.f32 %v768, %v772
    %v774 = vsub.f32 1.0, %v773
    %v775 = vmul.f32 %v772, %v774
    %v776 = vadd.f32 %v772, %v775
    %vm777 = vweird.f32 %v768
    %vm778 = vweird.f32 %v772
    %vm779 = vmor %vm777, %vm778
    %v780 = vsel %vm779, %v772, %v776
    %v781 = vand.u32 2147483647, %v768
    %vm782 = vcmp.eq.f32.partialorder %v781, 8.507059e+37
    %v783 = vand.u32 %v768, 2147483648
    %v784 = vor.u32 1.1754944e-38, %v783
    %v785 = vsel %vm782, %v784, %v780
    %v786 = vmul.f32 1.0, %v785
    %v787 = vrcp.pop %v769
    %v788 = vmul.f32 %v769, %v787
    %v789 = vsub.f32 1.0, %v788
    %v790 = vmul.f32 %v787, %v789
    %v791 = vadd.f32 %v787, %v790
    %vm792 = vweird.f32 %v769
    %vm793 = vweird.f32 %v787
    %vm794 = vmor %vm792, %vm793
    %v795 = vsel %vm794, %v787, %v791
    %v796 = vand.u32 2147483647, %v769
    %vm797 = vcmp.eq.f32.partialorder %v796, 8.507059e+37
    %v798 = vand.u32 %v769, 2147483648
    %v799 = vor.u32 1.1754944e-38, %v798
    %v800 = vsel %vm797, %v799, %v795
    %v801 = vmul.f32 1.0, %v800
    %v802 = vrcp.pop %v770
    %v803 = vmul.f32 %v770, %v802
    %v804 = vsub.f32 1.0, %v803
    %v805 = vmul.f32 %v802, %v804
    %v806 = vadd.f32 %v802, %v805
    %vm807 = vweird.f32 %v770
    %vm808 = vweird.f32 %v802
    %vm809 = vmor %vm807, %vm808
    %v810 = vsel %vm809, %v802, %v806
    %v811 = vand.u32 2147483647, %v770
    %vm812 = vcmp.eq.f32.partialorder %v811, 8.507059e+37
    %v813 = vand.u32 %v770, 2147483648
    %v814 = vor.u32 1.1754944e-38, %v813
    %v815 = vsel %vm812, %v814, %v810
    %v816 = vmul.f32 1.0, %v815
    %v817 = vrcp.pop %v771
    %v818 = vmul.f32 %v771, %v817
    %v819 = vsub.f32 1.0, %v818
    %v820 = vmul.f32 %v817, %v819
    %v821 = vadd.f32 %v817, %v820
    %vm822 = vweird.f32 %v771
    %vm823 = vweird.f32 %v817
    %vm824 = vmor %vm822, %vm823
    %v825 = vsel %vm824, %v817, %v821
    %v826 = vand.u32 2147483647, %v771
    %vm827 = vcmp.eq.f32.partialorder %v826, 8.507059e+37
    %v828 = vand.u32 %v771, 2147483648
    %v829 = vor.u32 1.1754944e-38, %v828
    %v830 = vsel %vm827, %v829, %v825
    %v831 = vmul.f32 1.0, %v830
    %v832 = vmul.f32 %v786, 1.0614054
    %v833 = vmul.f32 %v801, 1.0614054
    %v834 = vmul.f32 %v816, 1.0614054
    %v835 = vmul.f32 %v831, 1.0614054
    %v836 = vadd.f32 %v832, -1.4531521
    %v837 = vadd.f32 %v833, -1.4531521
    %v838 = vadd.f32 %v834, -1.4531521
    %v839 = vadd.f32 %v835, -1.4531521
    %v840 = vmul.f32 %v836, %v786
    %v841 = vmul.f32 %v837, %v801
    %v842 = vmul.f32 %v838, %v816
    %v843 = vmul.f32 %v839, %v831
    %v844 = vadd.f32 %v840, 1.4214138
    %v845 = vadd.f32 %v841, 1.4214138
    %v846 = vadd.f32 %v842, 1.4214138
    %v847 = vadd.f32 %v843, 1.4214138
    %v848 = vmul.f32 %v844, %v786
    %v849 = vmul.f32 %v845, %v801
    %v850 = vmul.f32 %v846, %v816
    %v851 = vmul.f32 %v847, %v831
    %v852 = vadd.f32 %v848, -0.28449672
    %v853 = vadd.f32 %v849, -0.28449672
    %v854 = vadd.f32 %v850, -0.28449672
    %v855 = vadd.f32 %v851, -0.28449672
    %v856 = vmul.f32 %v852, %v786
    %v857 = vmul.f32 %v853, %v801
    %v858 = vmul.f32 %v854, %v816
    %v859 = vmul.f32 %v855, %v831
    %v860 = vadd.f32 %v856, 0.2548296
    %v861 = vadd.f32 %v857, 0.2548296
    %v862 = vadd.f32 %v858, 0.2548296
    %v863 = vadd.f32 %v859, 0.2548296
    %v864 = vmul.f32 %v860, %v786
    %v865 = vmul.f32 %v861, %v801
    %v866 = vmul.f32 %v862, %v816
    %v867 = vmul.f32 %v863, %v831
    %v868 = vsub.f32 0.0, %v760
    %v869 = vsub.f32 0.0, %v761
    %v870 = vsub.f32 0.0, %v762
    %v871 = vsub.f32 0.0, %v763
    %v872 = vmul.f32 %v868, %v760
    %v873 = vmul.f32 %v869, %v761
    %v874 = vmul.f32 %v870, %v762
    %v875 = vmul.f32 %v871, %v763
    %v876 = vmul.f32 %v872, 1.442695
    %v877 = vpow.pop %v876
    %v878 = vmul.f32 %v873, 1.442695
    %v879 = vpow.pop %v878
    %v880 = vmul.f32 %v874, 1.442695
    %v881 = vpow.pop %v880
    %v882 = vmul.f32 %v875, 1.442695
    %v883 = vpow.pop %v882
    %v884 = vmul.f32 %v864, %v877
    %v885 = vmul.f32 %v865, %v879
    %v886 = vmul.f32 %v866, %v881
    %v887 = vmul.f32 %v867, %v883
    %v888 = vsub.f32 1.0, %v884
    %v889 = vsub.f32 1.0, %v885
    %v890 = vsub.f32 1.0, %v886
    %v891 = vsub.f32 1.0, %v887
    %v892 = vmul.f32 %v756, %v888
    %v893 = vmul.f32 %v757, %v889
    %v894 = vmul.f32 %v758, %v890
    %v895 = vmul.f32 %v759, %v891
    %v896 = vadd.f32 %v892, 1.0
    %v897 = vadd.f32 %v893, 1.0
    %v898 = vadd.f32 %v894, 1.0
    %v899 = vadd.f32 %v895, 1.0
    %v900 = vmul.f32 %v744, %v896
    %v901 = vmul.f32 %v745, %v897
    %v902 = vmul.f32 %v746, %v898
    %v903 = vmul.f32 %v747, %v899
    %v904 = vld [vmem:[%s17] sm:$0xff]
    %v905 = vld [vmem:[%s17 + $0x8] sm:$0xff]
    %v906 = vld [vmem:[%s17 + $0x10] sm:$0xff]
    %v907 = vld [vmem:[%s17 + $0x18] sm:$0xff]
    %v908 = vld [vmem:[%s17 + $0x20] sm:$0xff]
    %v909 = vld [vmem:[%s17 + $0x28] sm:$0xff]
    %v910 = vld [vmem:[%s17 + $0x30] sm:$0xff]
    %v911 = vld [vmem:[%s17 + $0x38] sm:$0xff]
    %v912 = vld [vmem:[%s17 + $0x40] sm:$0xff]
    %v913 = vld [vmem:[%s17 + $0x48] sm:$0xff]
    %v914 = vld [vmem:[%s17 + $0x50] sm:$0xff]
    %v915 = vld [vmem:[%s17 + $0x58] sm:$0xff]
    %v916 = vld [vmem:[%s17 + $0x60] sm:$0xff]
    %v917 = vld [vmem:[%s17 + $0x68] sm:$0xff]
    %v918 = vld [vmem:[%s17 + $0x70] sm:$0xff]
    %v919 = vld [vmem:[%s17 + $0x78] sm:$0xff]
    %920 = vmatpush.msra.mxu0 %v919
    %921 = vmatpush.msra.mxu0 %v918
    %922 = vmatpush.msra.mxu0 %v917
    %923 = vmatpush.msra.mxu0 %v916
    %924 = vmatpush.msra.mxu0 %v915
    %925 = vmatpush.msra.mxu0 %v914
    %926 = vmatpush.msra.mxu0 %v913
    %927 = vmatpush.msra.mxu0 %v912
    %928 = vmatpush.msra.mxu0 %v911
    %929 = vmatpush.msra.mxu0 %v910
    %930 = vmatpush.msra.mxu0 %v909
    %931 = vmatpush.msra.mxu0 %v908
    %932 = vmatpush.msra.mxu0 %v907
    %933 = vmatpush.msra.mxu0 %v906
    %934 = vmatpush.msra.mxu0 %v905
    %935 = vmatpush.msra.mxu0 %v904
    %936 = vmatmul.f32.gmra.mxu0 %v900
    %v937 = vpop.f32.mrf.mxu0
    %v938 = vadd.f32 0.0, %v937
    %939 = vmatmul.f32.gmra.mxu0 %v901
    %v940 = vpop.f32.mrf.mxu0
    %v941 = vadd.f32 0.0, %v940
    %942 = vmatmul.f32.gmra.mxu0 %v902
    %v943 = vpop.f32.mrf.mxu0
    %v944 = vadd.f32 0.0, %v943
    %945 = vmatmul.f32.gmra.mxu0 %v903
    %v946 = vpop.f32.mrf.mxu0
    %v947 = vadd.f32 0.0, %v946
    %948 = vdwg.mxu0
    %v949 = vadd.f32 %v587, %v938
    %v950 = vadd.f32 %v588, %v941
    %v951 = vadd.f32 %v589, %v944
    %v952 = vadd.f32 %v590, %v947
    %v953 = vld [vmem:[%s18] sm:$0x1]
    %v955 = vperm.slane %v953, 0
    %v957 = vadd.f32 %v949, %v955
    %v958 = vadd.f32 %v950, %v955
    %v959 = vadd.f32 %v951, %v955
    %v960 = vadd.f32 %v952, %v955
    %s961 = scalar_lea.vmem %s3, 1
    %v962 = vld [vmem:[%s961] sm:$0x1]
    %s963 = scalar_lea.vmem %s4, 1
    %v964 = vld [vmem:[%s963] sm:$0x1]
    %v965 = vsel %vm86, %v957, 0.0
    %966 = vadd.xlane.f32.xlu0 %v965
    %v967 = vpop.xlane.xlu0 %966
    %v968 = vsel %vm86, %v958, 0.0
    %969 = vadd.xlane.f32.xlu0 %v968
    %v970 = vpop.xlane.xlu0 %969
    %v971 = vsel %vm86, %v959, 0.0
    %972 = vadd.xlane.f32.xlu0 %v971
    %v973 = vpop.xlane.xlu0 %972
    %v974 = vsel %vm86, %v960, 0.0
    %975 = vadd.xlane.f32.xlu0 %v974
    %v976 = vpop.xlane.xlu0 %975
    %v977 = vmul.f32 %v967, %v174
    %v978 = vmul.f32 %v970, %v174
    %v979 = vmul.f32 %v973, %v174
    %v980 = vmul.f32 %v976, %v174
    %v981 = vsub.f32 %v957, %v977
    %v982 = vsub.f32 %v958, %v978
    %v983 = vsub.f32 %v959, %v979
    %v984 = vsub.f32 %v960, %v980
    %v985 = vmul.f32 %v981, %v981
    %v986 = vmul.f32 %v982, %v982
    %v987 = vmul.f32 %v983, %v983
    %v988 = vmul.f32 %v984, %v984
    %v989 = vsel %vm86, %v985, 0.0
    %990 = vadd.xlane.f32.xlu0 %v989
    %v991 = vpop.xlane.xlu0 %990
    %v992 = vsel %vm86, %v986, 0.0
    %993 = vadd.xlane.f32.xlu0 %v992
    %v994 = vpop.xlane.xlu0 %993
    %v995 = vsel %vm86, %v987, 0.0
    %996 = vadd.xlane.f32.xlu0 %v995
    %v997 = vpop.xlane.xlu0 %996
    %v998 = vsel %vm86, %v988, 0.0
    %999 = vadd.xlane.f32.xlu0 %v998
    %v1000 = vpop.xlane.xlu0 %999
    %v1001 = vmul.f32 %v991, %v174
    %v1002 = vmul.f32 %v994, %v174
    %v1003 = vmul.f32 %v997, %v174
    %v1004 = vmul.f32 %v1000, %v174
    %v1005 = vadd.f32 %v1001, 1e-05
    %v1006 = vadd.f32 %v1002, 1e-05
    %v1007 = vadd.f32 %v1003, 1e-05
    %v1008 = vadd.f32 %v1004, 1e-05
    %v1009 = vrsqrt.pop %v1005
    %v1010 = vmul.f32 %v1009, %v1005
    %v1011 = vmul.f32 %v1010, %v1009
    %v1012 = vmul.f32 0.5, %v1011
    %v1013 = vsub.f32 1.5, %v1012
    %v1014 = vmul.f32 %v1009, %v1013
    %vm1015 = vweird.f32 %v1005
    %vm1016 = vweird.f32 %v1009
    %vm1017 = vmor %vm1015, %vm1016
    %v1018 = vsel %vm1017, %v1009, %v1014
    %v1019 = vrsqrt.pop %v1006
    %v1020 = vmul.f32 %v1019, %v1006
    %v1021 = vmul.f32 %v1020, %v1019
    %v1022 = vmul.f32 0.5, %v1021
    %v1023 = vsub.f32 1.5, %v1022
    %v1024 = vmul.f32 %v1019, %v1023
    %vm1025 = vweird.f32 %v1006
    %vm1026 = vweird.f32 %v1019
    %vm1027 = vmor %vm1025, %vm1026
    %v1028 = vsel %vm1027, %v1019, %v1024
    %v1029 = vrsqrt.pop %v1007
    %v1030 = vmul.f32 %v1029, %v1007
    %v1031 = vmul.f32 %v1030, %v1029
    %v1032 = vmul.f32 0.5, %v1031
    %v1033 = vsub.f32 1.5, %v1032
    %v1034 = vmul.f32 %v1029, %v1033
    %vm1035 = vweird.f32 %v1007
    %vm1036 = vweird.f32 %v1029
    %vm1037 = vmor %vm1035, %vm1036
    %v1038 = vsel %vm1037, %v1029, %v1034
    %v1039 = vrsqrt.pop %v1008
    %v1040 = vmul.f32 %v1039, %v1008
    %v1041 = vmul.f32 %v1040, %v1039
    %v1042 = vmul.f32 0.5, %v1041
    %v1043 = vsub.f32 1.5, %v1042
    %v1044 = vmul.f32 %v1039, %v1043
    %vm1045 = vweird.f32 %v1008
    %vm1046 = vweird.f32 %v1039
    %vm1047 = vmor %vm1045, %vm1046
    %v1048 = vsel %vm1047, %v1039, %v1044
    %v1049 = vmul.f32 %v981, %v1018
    %v1050 = vmul.f32 %v982, %v1028
    %v1051 = vmul.f32 %v983, %v1038
    %v1052 = vmul.f32 %v984, %v1048
    %v1054 = vperm.slane %v962, 0
    %v1056 = vmul.f32 %v1049, %v1054
    %v1057 = vmul.f32 %v1050, %v1054
    %v1058 = vmul.f32 %v1051, %v1054
    %v1059 = vmul.f32 %v1052, %v1054
    %v1061 = vperm.slane %v964, 0
    %v1063 = vadd.f32 %v1056, %v1061
    %v1064 = vadd.f32 %v1057, %v1061
    %v1065 = vadd.f32 %v1058, %v1061
    %v1066 = vadd.f32 %v1059, %v1061
    %s1067 = scalar_lea.vmem %s5, 32
    %v1068 = vld [vmem:[%s1067] sm:$0xff]
    %v1069 = vld [vmem:[%s1067 + $0x8] sm:$0xff]
    %v1070 = vld [vmem:[%s1067 + $0x10] sm:$0xff]
    %v1071 = vld [vmem:[%s1067 + $0x18] sm:$0xff]
    %s1072 = scalar_lea.vmem %s6, 1
    %v1073 = vld [vmem:[%s1072] sm:$0x1]
    %v1075 = vperm.slane %v1073, 0
    %v1078 = vsel %vm86, %v1063, 0
    %v1081 = vsel %vm86, %v1064, 0
    %v1084 = vsel %vm86, %v1065, 0
    %v1087 = vsel %vm86, %v1066, 0
    %1089 = vmatpush.msra.mxu0 0.0
    %1090 = vmatpush.msra.mxu0 0.0
    %1091 = vmatpush.msra.mxu0 0.0
    %1092 = vmatpush.msra.mxu0 0.0
    %1093 = vmatpush.msra.mxu0 0.0
    %1094 = vmatpush.msra.mxu0 0.0
    %1095 = vmatpush.msra.mxu0 0.0
    %1096 = vmatpush.msra.mxu0 0.0
    %1097 = vmatpush.msra.mxu0 0.0
    %1098 = vmatpush.msra.mxu0 0.0
    %1099 = vmatpush.msra.mxu0 0.0
    %1100 = vmatpush.msra.mxu0 0.0
    %1101 = vmatpush.msra.mxu0 %v1071
    %1102 = vmatpush.msra.mxu0 %v1070
    %1103 = vmatpush.msra.mxu0 %v1069
    %1104 = vmatpush.msra.mxu0 %v1068
    %1105 = vmatmul.f32.gmra.mxu0 %v1078
    %v1106 = vpop.f32.mrf.mxu0
    %v1107 = vadd.f32 %v1075, %v1106
    %1108 = vmatmul.f32.gmra.mxu0 %v1081
    %v1109 = vpop.f32.mrf.mxu0
    %v1110 = vadd.f32 %v1075, %v1109
    %1111 = vmatmul.f32.gmra.mxu0 %v1084
    %v1112 = vpop.f32.mrf.mxu0
    %v1113 = vadd.f32 %v1075, %v1112
    %1114 = vmatmul.f32.gmra.mxu0 %v1087
    %v1115 = vpop.f32.mrf.mxu0
    %v1116 = vadd.f32 %v1075, %v1115
    %1117 = vdwg.mxu0
    %s1118 = scalar_lea.vmem %s7, 32
    %v1119 = vld [vmem:[%s1118] sm:$0xff]
    %v1120 = vld [vmem:[%s1118 + $0x8] sm:$0xff]
    %v1121 = vld [vmem:[%s1118 + $0x10] sm:$0xff]
    %v1122 = vld [vmem:[%s1118 + $0x18] sm:$0xff]
    %s1123 = scalar_lea.vmem %s8, 1
    %v1124 = vld [vmem:[%s1123] sm:$0x1]
    %v1126 = vperm.slane %v1124, 0
    %1128 = vmatpush.msra.mxu0 0.0
    %1129 = vmatpush.msra.mxu0 0.0
    %1130 = vmatpush.msra.mxu0 0.0
    %1131 = vmatpush.msra.mxu0 0.0
    %1132 = vmatpush.msra.mxu0 0.0
    %1133 = vmatpush.msra.mxu0 0.0
    %1134 = vmatpush.msra.mxu0 0.0
    %1135 = vmatpush.msra.mxu0 0.0
    %1136 = vmatpush.msra.mxu0 0.0
    %1137 = vmatpush.msra.mxu0 0.0
    %1138 = vmatpush.msra.mxu0 0.0
    %1139 = vmatpush.msra.mxu0 0.0
    %1140 = vmatpush.msra.mxu0 %v1122
    %1141 = vmatpush.msra.mxu0 %v1121
    %1142 = vmatpush.msra.mxu0 %v1120
    %1143 = vmatpush.msra.mxu0 %v1119
    %1144 = vmatmul.f32.gmra.mxu0 %v1078
    %v1145 = vpop.f32.mrf.mxu0
    %v1146 = vadd.f32 %v1126, %v1145
    %1147 = vmatmul.f32.gmra.mxu0 %v1081
    %v1148 = vpop.f32.mrf.mxu0
    %v1149 = vadd.f32 %v1126, %v1148
    %1150 = vmatmul.f32.gmra.mxu0 %v1084
    %v1151 = vpop.f32.mrf.mxu0
    %v1152 = vadd.f32 %v1126, %v1151
    %1153 = vmatmul.f32.gmra.mxu0 %v1087
    %v1154 = vpop.f32.mrf.mxu0
    %v1155 = vadd.f32 %v1126, %v1154
    %1156 = vdwg.mxu0
    %s1157 = scalar_lea.vmem %s9, 32
    %v1158 = vld [vmem:[%s1157] sm:$0xff]
    %v1159 = vld [vmem:[%s1157 + $0x8] sm:$0xff]
    %v1160 = vld [vmem:[%s1157 + $0x10] sm:$0xff]
    %v1161 = vld [vmem:[%s1157 + $0x18] sm:$0xff]
    %s1162 = scalar_lea.vmem %s10, 1
    %v1163 = vld [vmem:[%s1162] sm:$0x1]
    %v1165 = vperm.slane %v1163, 0
    %1167 = vmatpush.msra.mxu0 0.0
    %1168 = vmatpush.msra.mxu0 0.0
    %1169 = vmatpush.msra.mxu0 0.0
    %1170 = vmatpush.msra.mxu0 0.0
    %1171 = vmatpush.msra.mxu0 0.0
    %1172 = vmatpush.msra.mxu0 0.0
    %1173 = vmatpush.msra.mxu0 0.0
    %1174 = vmatpush.msra.mxu0 0.0
    %1175 = vmatpush.msra.mxu0 0.0
    %1176 = vmatpush.msra.mxu0 0.0
    %1177 = vmatpush.msra.mxu0 0.0
    %1178 = vmatpush.msra.mxu0 0.0
    %1179 = vmatpush.msra.mxu0 %v1161
    %1180 = vmatpush.msra.mxu0 %v1160
    %1181 = vmatpush.msra.mxu0 %v1159
    %1182 = vmatpush.msra.mxu0 %v1158
    %1183 = vmatmul.f32.gmra.mxu0 %v1078
    %v1184 = vpop.f32.mrf.mxu0
    %v1185 = vadd.f32 %v1165, %v1184
    %1186 = vmatmul.f32.gmra.mxu0 %v1081
    %v1187 = vpop.f32.mrf.mxu0
    %v1188 = vadd.f32 %v1165, %v1187
    %1189 = vmatmul.f32.gmra.mxu0 %v1084
    %v1190 = vpop.f32.mrf.mxu0
    %v1191 = vadd.f32 %v1165, %v1190
    %1192 = vmatmul.f32.gmra.mxu0 %v1087
    %v1193 = vpop.f32.mrf.mxu0
    %v1194 = vadd.f32 %v1165, %v1193
    %1195 = vdwg.mxu0
    %v1197 = vsel %vm86, %v1107, 0
    %v1200 = vsel %vm86, %v1110, 0
    %v1203 = vsel %vm86, %v1113, 0
    %v1206 = vsel %vm86, %v1116, 0
    %v1209 = vsel %vm86, %v1146, 0
    %v1212 = vsel %vm86, %v1149, 0
    %v1215 = vsel %vm86, %v1152, 0
    %v1218 = vsel %vm86, %v1155, 0
    %1220 = vmatpush.xpose.msra.mxu0 0.0
    %1221 = vmatpush.xpose.msra.mxu0 0.0
    %1222 = vmatpush.xpose.msra.mxu0 0.0
    %1223 = vmatpush.xpose.msra.mxu0 0.0
    %1224 = vmatpush.xpose.msra.mxu0 0.0
    %1225 = vmatpush.xpose.msra.mxu0 0.0
    %1226 = vmatpush.xpose.msra.mxu0 0.0
    %1227 = vmatpush.xpose.msra.mxu0 0.0
    %1228 = vmatpush.xpose.msra.mxu0 0.0
    %1229 = vmatpush.xpose.msra.mxu0 0.0
    %1230 = vmatpush.xpose.msra.mxu0 0.0
    %1231 = vmatpush.xpose.msra.mxu0 0.0
    %1232 = vmatpush.xpose.msra.mxu0 %v1218
    %1233 = vmatpush.xpose.msra.mxu0 %v1215
    %1234 = vmatpush.xpose.msra.mxu0 %v1212
    %1235 = vmatpush.xpose.msra.mxu0 %v1209
    %1236 = vmatmul.f32.gmra.mxu0 %v1197
    %v1237 = vpop.f32.mrf.mxu0
    %v1238 = vadd.f32 0.0, %v1237
    %1239 = vmatmul.f32.gmra.mxu0 %v1200
    %v1240 = vpop.f32.mrf.mxu0
    %v1241 = vadd.f32 0.0, %v1240
    %1242 = vmatmul.f32.gmra.mxu0 %v1203
    %v1243 = vpop.f32.mrf.mxu0
    %v1244 = vadd.f32 0.0, %v1243
    %1245 = vmatmul.f32.gmra.mxu0 %v1206
    %v1246 = vpop.f32.mrf.mxu0
    %v1247 = vadd.f32 0.0, %v1246
    %1248 = vdwg.mxu0
    %v1249 = vmul.f32 %v1238, 0.17677669
    %v1250 = vmul.f32 %v1241, 0.17677669
    %v1251 = vmul.f32 %v1244, 0.17677669
    %v1252 = vmul.f32 %v1247, 0.17677669
    %v1253 = vsel %vm150, %v1249, -1e+30
    %v1254 = vsel %vm151, %v1250, -1e+30
    %v1255 = vsel %vm152, %v1251, -1e+30
    %v1256 = vsel %vm153, %v1252, -1e+30
    %v1257 = vsel %vm86, %v1253, -inf
    %1258 = vmax.xlane.f32.xlu0 %v1257
    %v1259 = vpop.xlane.xlu0 %1258
    %v1260 = vsel %vm86, %v1254, -inf
    %1261 = vmax.xlane.f32.xlu0 %v1260
    %v1262 = vpop.xlane.xlu0 %1261
    %v1263 = vsel %vm86, %v1255, -inf
    %1264 = vmax.xlane.f32.xlu0 %v1263
    %v1265 = vpop.xlane.xlu0 %1264
    %v1266 = vsel %vm86, %v1256, -inf
    %1267 = vmax.xlane.f32.xlu0 %v1266
    %v1268 = vpop.xlane.xlu0 %1267
    %v1269 = vsub.f32 %v1253, %v1259
    %v1270 = vsub.f32 %v1254, %v1262
    %v1271 = vsub.f32 %v1255, %v1265
    %v1272 = vsub.f32 %v1256, %v1268
    %v1273 = vmul.f32 %v1269, 1.442695
    %v1274 = vpow.pop %v1273
    %v1275 = vmul.f32 %v1270, 1.442695
    %v1276 = vpow.pop %v1275
    %v1277 = vmul.f32 %v1271, 1.442695
    %v1278 = vpow.pop %v1277
    %v1279 = vmul.f32 %v1272, 1.442695
    %v1280 = vpow.pop %v1279
    %v1281 = vsel %vm86, %v1274, 0.0
    %1282 = vadd.xlane.f32.xlu0 %v1281
    %v1283 = vpop.xlane.xlu0 %1282
    %v1284 = vsel %vm86, %v1276, 0.0
    %1285 = vadd.xlane.f32.xlu0 %v1284
    %v1286 = vpop.xlane.xlu0 %1285
    %v1287 = vsel %vm86, %v1278, 0.0
    %1288 = vadd.xlane.f32.xlu0 %v1287
    %v1289 = vpop.xlane.xlu0 %1288
    %v1290 = vsel %vm86, %v1280, 0.0
    %1291 = vadd.xlane.f32.xlu0 %v1290
    %v1292 = vpop.xlane.xlu0 %1291
    %v1293 = vrcp.pop %v1283
    %v1294 = vrcp.pop %v1286
    %v1295 = vrcp.pop %v1289
    %v1296 = vrcp.pop %v1292
    %v1297 = vmul.f32 %v1274, %v1293
    %v1298 = vmul.f32 %v1276, %v1294
    %v1299 = vmul.f32 %v1278, %v1295
    %v1300 = vmul.f32 %v1280, %v1296
    %v1302 = vsel %vm86, %v1297, 0
    %v1305 = vsel %vm86, %v1298, 0
    %v1308 = vsel %vm86, %v1299, 0
    %v1311 = vsel %vm86, %v1300, 0
    %1313 = vmatpush.msra.mxu0 0.0
    %1314 = vmatpush.msra.mxu0 0.0
    %1315 = vmatpush.msra.mxu0 0.0
    %1316 = vmatpush.msra.mxu0 0.0
    %1317 = vmatpush.msra.mxu0 0.0
    %1318 = vmatpush.msra.mxu0 0.0
    %1319 = vmatpush.msra.mxu0 0.0
    %1320 = vmatpush.msra.mxu0 0.0
    %1321 = vmatpush.msra.mxu0 0.0
    %1322 = vmatpush.msra.mxu0 0.0
    %1323 = vmatpush.msra.mxu0 0.0
    %1324 = vmatpush.msra.mxu0 0.0
    %1325 = vmatpush.msra.mxu0 %v1194
    %1326 = vmatpush.msra.mxu0 %v1191
    %1327 = vmatpush.msra.mxu0 %v1188
    %1328 = vmatpush.msra.mxu0 %v1185
    %1329 = vmatmul.f32.gmra.mxu0 %v1302
    %v1330 = vpop.f32.mrf.mxu0
    %v1331 = vadd.f32 0.0, %v1330
    %1332 = vmatmul.f32.gmra.mxu0 %v1305
    %v1333 = vpop.f32.mrf.mxu0
    %v1334 = vadd.f32 0.0, %v1333
    %1335 = vmatmul.f32.gmra.mxu0 %v1308
    %v1336 = vpop.f32.mrf.mxu0
    %v1337 = vadd.f32 0.0, %v1336
    %1338 = vmatmul.f32.gmra.mxu0 %v1311
    %v1339 = vpop.f32.mrf.mxu0
    %v1340 = vadd.f32 0.0, %v1339
    %1341 = vdwg.mxu0
    %s1342 = scalar_lea.vmem %s11, 32
    %v1343 = vld [vmem:[%s1342] sm:$0xff]
    %v1344 = vld [vmem:[%s1342 + $0x8] sm:$0xff]
    %v1345 = vld [vmem:[%s1342 + $0x10] sm:$0xff]
    %v1346 = vld [vmem:[%s1342 + $0x18] sm:$0xff]
    %v1348 = vsel %vm86, %v1331, 0
    %v1351 = vsel %vm86, %v1334, 0
    %v1354 = vsel %vm86, %v1337, 0
    %v1357 = vsel %vm86, %v1340, 0
    %1359 = vmatpush.msra.mxu0 0.0
    %1360 = vmatpush.msra.mxu0 0.0
    %1361 = vmatpush.msra.mxu0 0.0
    %1362 = vmatpush.msra.mxu0 0.0
    %1363 = vmatpush.msra.mxu0 0.0
    %1364 = vmatpush.msra.mxu0 0.0
    %1365 = vmatpush.msra.mxu0 0.0
    %1366 = vmatpush.msra.mxu0 0.0
    %1367 = vmatpush.msra.mxu0 0.0
    %1368 = vmatpush.msra.mxu0 0.0
    %1369 = vmatpush.msra.mxu0 0.0
    %1370 = vmatpush.msra.mxu0 0.0
    %1371 = vmatpush.msra.mxu0 %v1346
    %1372 = vmatpush.msra.mxu0 %v1345
    %1373 = vmatpush.msra.mxu0 %v1344
    %1374 = vmatpush.msra.mxu0 %v1343
    %1375 = vmatmul.f32.gmra.mxu0 %v1348
    %v1376 = vpop.f32.mrf.mxu0
    %v1377 = vadd.f32 0.0, %v1376
    %1378 = vmatmul.f32.gmra.mxu0 %v1351
    %v1379 = vpop.f32.mrf.mxu0
    %v1380 = vadd.f32 0.0, %v1379
    %1381 = vmatmul.f32.gmra.mxu0 %v1354
    %v1382 = vpop.f32.mrf.mxu0
    %v1383 = vadd.f32 0.0, %v1382
    %1384 = vmatmul.f32.gmra.mxu0 %v1357
    %v1385 = vpop.f32.mrf.mxu0
    %v1386 = vadd.f32 0.0, %v1385
    %1387 = vdwg.mxu0
    %v1388 = vadd.f32 %v957, %v1377
    %v1389 = vadd.f32 %v958, %v1380
    %v1390 = vadd.f32 %v959, %v1383
    %v1391 = vadd.f32 %v960, %v1386
    %s1392 = scalar_lea.vmem %s12, 1
    %v1393 = vld [vmem:[%s1392] sm:$0x1]
    %v1395 = vperm.slane %v1393, 0
    %v1397 = vadd.f32 %v1388, %v1395
    %v1398 = vadd.f32 %v1389, %v1395
    %v1399 = vadd.f32 %v1390, %v1395
    %v1400 = vadd.f32 %v1391, %v1395
    %s1401 = scalar_lea.vmem %s13, 1
    %v1402 = vld [vmem:[%s1401] sm:$0x1]
    %s1403 = scalar_lea.vmem %s14, 1
    %v1404 = vld [vmem:[%s1403] sm:$0x1]
    %v1405 = vsel %vm86, %v1397, 0.0
    %1406 = vadd.xlane.f32.xlu0 %v1405
    %v1407 = vpop.xlane.xlu0 %1406
    %v1408 = vsel %vm86, %v1398, 0.0
    %1409 = vadd.xlane.f32.xlu0 %v1408
    %v1410 = vpop.xlane.xlu0 %1409
    %v1411 = vsel %vm86, %v1399, 0.0
    %1412 = vadd.xlane.f32.xlu0 %v1411
    %v1413 = vpop.xlane.xlu0 %1412
    %v1414 = vsel %vm86, %v1400, 0.0
    %1415 = vadd.xlane.f32.xlu0 %v1414
    %v1416 = vpop.xlane.xlu0 %1415
    %v1417 = vmul.f32 %v1407, %v174
    %v1418 = vmul.f32 %v1410, %v174
    %v1419 = vmul.f32 %v1413, %v174
    %v1420 = vmul.f32 %v1416, %v174
    %v1421 = vsub.f32 %v1397, %v1417
    %v1422 = vsub.f32 %v1398, %v1418
    %v1423 = vsub.f32 %v1399, %v1419
    %v1424 = vsub.f32 %v1400, %v1420
    %v1425 = vmul.f32 %v1421, %v1421
    %v1426 = vmul.f32 %v1422, %v1422
    %v1427 = vmul.f32 %v1423, %v1423
    %v1428 = vmul.f32 %v1424, %v1424
    %v1429 = vsel %vm86, %v1425, 0.0
    %1430 = vadd.xlane.f32.xlu0 %v1429
    %v1431 = vpop.xlane.xlu0 %1430
    %v1432 = vsel %vm86, %v1426, 0.0
    %1433 = vadd.xlane.f32.xlu0 %v1432
    %v1434 = vpop.xlane.xlu0 %1433
    %v1435 = vsel %vm86, %v1427, 0.0
    %1436 = vadd.xlane.f32.xlu0 %v1435
    %v1437 = vpop.xlane.xlu0 %1436
    %v1438 = vsel %vm86, %v1428, 0.0
    %1439 = vadd.xlane.f32.xlu0 %v1438
    %v1440 = vpop.xlane.xlu0 %1439
    %v1441 = vmul.f32 %v1431, %v174
    %v1442 = vmul.f32 %v1434, %v174
    %v1443 = vmul.f32 %v1437, %v174
    %v1444 = vmul.f32 %v1440, %v174
    %v1445 = vadd.f32 %v1441, 1e-05
    %v1446 = vadd.f32 %v1442, 1e-05
    %v1447 = vadd.f32 %v1443, 1e-05
    %v1448 = vadd.f32 %v1444, 1e-05
    %v1449 = vrsqrt.pop %v1445
    %v1450 = vmul.f32 %v1449, %v1445
    %v1451 = vmul.f32 %v1450, %v1449
    %v1452 = vmul.f32 0.5, %v1451
    %v1453 = vsub.f32 1.5, %v1452
    %v1454 = vmul.f32 %v1449, %v1453
    %vm1455 = vweird.f32 %v1445
    %vm1456 = vweird.f32 %v1449
    %vm1457 = vmor %vm1455, %vm1456
    %v1458 = vsel %vm1457, %v1449, %v1454
    %v1459 = vrsqrt.pop %v1446
    %v1460 = vmul.f32 %v1459, %v1446
    %v1461 = vmul.f32 %v1460, %v1459
    %v1462 = vmul.f32 0.5, %v1461
    %v1463 = vsub.f32 1.5, %v1462
    %v1464 = vmul.f32 %v1459, %v1463
    %vm1465 = vweird.f32 %v1446
    %vm1466 = vweird.f32 %v1459
    %vm1467 = vmor %vm1465, %vm1466
    %v1468 = vsel %vm1467, %v1459, %v1464
    %v1469 = vrsqrt.pop %v1447
    %v1470 = vmul.f32 %v1469, %v1447
    %v1471 = vmul.f32 %v1470, %v1469
    %v1472 = vmul.f32 0.5, %v1471
    %v1473 = vsub.f32 1.5, %v1472
    %v1474 = vmul.f32 %v1469, %v1473
    %vm1475 = vweird.f32 %v1447
    %vm1476 = vweird.f32 %v1469
    %vm1477 = vmor %vm1475, %vm1476
    %v1478 = vsel %vm1477, %v1469, %v1474
    %v1479 = vrsqrt.pop %v1448
    %v1480 = vmul.f32 %v1479, %v1448
    %v1481 = vmul.f32 %v1480, %v1479
    %v1482 = vmul.f32 0.5, %v1481
    %v1483 = vsub.f32 1.5, %v1482
    %v1484 = vmul.f32 %v1479, %v1483
    %vm1485 = vweird.f32 %v1448
    %vm1486 = vweird.f32 %v1479
    %vm1487 = vmor %vm1485, %vm1486
    %v1488 = vsel %vm1487, %v1479, %v1484
    %v1489 = vmul.f32 %v1421, %v1458
    %v1490 = vmul.f32 %v1422, %v1468
    %v1491 = vmul.f32 %v1423, %v1478
    %v1492 = vmul.f32 %v1424, %v1488
    %v1494 = vperm.slane %v1402, 0
    %v1496 = vmul.f32 %v1489, %v1494
    %v1497 = vmul.f32 %v1490, %v1494
    %v1498 = vmul.f32 %v1491, %v1494
    %v1499 = vmul.f32 %v1492, %v1494
    %v1501 = vperm.slane %v1404, 0
    %v1503 = vadd.f32 %v1496, %v1501
    %v1504 = vadd.f32 %v1497, %v1501
    %v1505 = vadd.f32 %v1498, %v1501
    %v1506 = vadd.f32 %v1499, %v1501
    %s1507 = scalar_lea.vmem %s15, 32
    %v1508 = vld [vmem:[%s1507] sm:$0xff]
    %v1509 = vld [vmem:[%s1507 + $0x8] sm:$0xff]
    %v1510 = vld [vmem:[%s1507 + $0x10] sm:$0xff]
    %v1511 = vld [vmem:[%s1507 + $0x18] sm:$0xff]
    %s1512 = scalar_lea.vmem %s16, 1
    %v1513 = vld [vmem:[%s1512] sm:$0x1]
    %v1515 = vperm.slane %v1513, 0
    %v1518 = vsel %vm86, %v1503, 0
    %v1521 = vsel %vm86, %v1504, 0
    %v1524 = vsel %vm86, %v1505, 0
    %v1527 = vsel %vm86, %v1506, 0
    %1529 = vmatpush.msra.mxu0 0.0
    %1530 = vmatpush.msra.mxu0 0.0
    %1531 = vmatpush.msra.mxu0 0.0
    %1532 = vmatpush.msra.mxu0 0.0
    %1533 = vmatpush.msra.mxu0 0.0
    %1534 = vmatpush.msra.mxu0 0.0
    %1535 = vmatpush.msra.mxu0 0.0
    %1536 = vmatpush.msra.mxu0 0.0
    %1537 = vmatpush.msra.mxu0 0.0
    %1538 = vmatpush.msra.mxu0 0.0
    %1539 = vmatpush.msra.mxu0 0.0
    %1540 = vmatpush.msra.mxu0 0.0
    %1541 = vmatpush.msra.mxu0 %v1511
    %1542 = vmatpush.msra.mxu0 %v1510
    %1543 = vmatpush.msra.mxu0 %v1509
    %1544 = vmatpush.msra.mxu0 %v1508
    %1545 = vmatmul.f32.gmra.mxu0 %v1518
    %v1546 = vpop.f32.mrf.mxu0
    %v1547 = vadd.f32 %v1515, %v1546
    %1548 = vmatmul.f32.gmra.mxu0 %v1521
    %v1549 = vpop.f32.mrf.mxu0
    %v1550 = vadd.f32 %v1515, %v1549
    %1551 = vmatmul.f32.gmra.mxu0 %v1524
    %v1552 = vpop.f32.mrf.mxu0
    %v1553 = vadd.f32 %v1515, %v1552
    %1554 = vmatmul.f32.gmra.mxu0 %v1527
    %v1555 = vpop.f32.mrf.mxu0
    %v1556 = vadd.f32 %v1515, %v1555
    %1557 = vdwg.mxu0
    %v1558 = vmul.f32 %v1547, 0.5
    %v1559 = vmul.f32 %v1550, 0.5
    %v1560 = vmul.f32 %v1553, 0.5
    %v1561 = vmul.f32 %v1556, 0.5
    %v1562 = vmul.f32 %v1547, 0.70710677
    %v1563 = vmul.f32 %v1550, 0.70710677
    %v1564 = vmul.f32 %v1553, 0.70710677
    %v1565 = vmul.f32 %v1556, 0.70710677
    %vm1566 = vcmp.ge.f32.partialorder %v1562, 0.0
    %vm1567 = vcmp.ge.f32.partialorder %v1563, 0.0
    %vm1568 = vcmp.ge.f32.partialorder %v1564, 0.0
    %vm1569 = vcmp.ge.f32.partialorder %v1565, 0.0
    %v1570 = vsel %vm1566, 1.0, -1.0
    %v1571 = vsel %vm1567, 1.0, -1.0
    %v1572 = vsel %vm1568, 1.0, -1.0
    %v1573 = vsel %vm1569, 1.0, -1.0
    %v1574 = vmul.f32 %v1562, %v1570
    %v1575 = vmul.f32 %v1563, %v1571
    %v1576 = vmul.f32 %v1564, %v1572
    %v1577 = vmul.f32 %v1565, %v1573
    %v1578 = vmul.f32 %v1574, 0.3275911
    %v1579 = vmul.f32 %v1575, 0.3275911
    %v1580 = vmul.f32 %v1576, 0.3275911
    %v1581 = vmul.f32 %v1577, 0.3275911
    %v1582 = vadd.f32 %v1578, 1.0
    %v1583 = vadd.f32 %v1579, 1.0
    %v1584 = vadd.f32 %v1580, 1.0
    %v1585 = vadd.f32 %v1581, 1.0
    %v1586 = vrcp.pop %v1582
    %v1587 = vmul.f32 %v1582, %v1586
    %v1588 = vsub.f32 1.0, %v1587
    %v1589 = vmul.f32 %v1586, %v1588
    %v1590 = vadd.f32 %v1586, %v1589
    %vm1591 = vweird.f32 %v1582
    %vm1592 = vweird.f32 %v1586
    %vm1593 = vmor %vm1591, %vm1592
    %v1594 = vsel %vm1593, %v1586, %v1590
    %v1595 = vand.u32 2147483647, %v1582
    %vm1596 = vcmp.eq.f32.partialorder %v1595, 8.507059e+37
    %v1597 = vand.u32 %v1582, 2147483648
    %v1598 = vor.u32 1.1754944e-38, %v1597
    %v1599 = vsel %vm1596, %v1598, %v1594
    %v1600 = vmul.f32 1.0, %v1599
    %v1601 = vrcp.pop %v1583
    %v1602 = vmul.f32 %v1583, %v1601
    %v1603 = vsub.f32 1.0, %v1602
    %v1604 = vmul.f32 %v1601, %v1603
    %v1605 = vadd.f32 %v1601, %v1604
    %vm1606 = vweird.f32 %v1583
    %vm1607 = vweird.f32 %v1601
    %vm1608 = vmor %vm1606, %vm1607
    %v1609 = vsel %vm1608, %v1601, %v1605
    %v1610 = vand.u32 2147483647, %v1583
    %vm1611 = vcmp.eq.f32.partialorder %v1610, 8.507059e+37
    %v1612 = vand.u32 %v1583, 2147483648
    %v1613 = vor.u32 1.1754944e-38, %v1612
    %v1614 = vsel %vm1611, %v1613, %v1609
    %v1615 = vmul.f32 1.0, %v1614
    %v1616 = vrcp.pop %v1584
    %v1617 = vmul.f32 %v1584, %v1616
    %v1618 = vsub.f32 1.0, %v1617
    %v1619 = vmul.f32 %v1616, %v1618
    %v1620 = vadd.f32 %v1616, %v1619
    %vm1621 = vweird.f32 %v1584
    %vm1622 = vweird.f32 %v1616
    %vm1623 = vmor %vm1621, %vm1622
    %v1624 = vsel %vm1623, %v1616, %v1620
    %v1625 = vand.u32 2147483647, %v1584
    %vm1626 = vcmp.eq.f32.partialorder %v1625, 8.507059e+37
    %v1627 = vand.u32 %v1584, 2147483648
    %v1628 = vor.u32 1.1754944e-38, %v1627
    %v1629 = vsel %vm1626, %v1628, %v1624
    %v1630 = vmul.f32 1.0, %v1629
    %v1631 = vrcp.pop %v1585
    %v1632 = vmul.f32 %v1585, %v1631
    %v1633 = vsub.f32 1.0, %v1632
    %v1634 = vmul.f32 %v1631, %v1633
    %v1635 = vadd.f32 %v1631, %v1634
    %vm1636 = vweird.f32 %v1585
    %vm1637 = vweird.f32 %v1631
    %vm1638 = vmor %vm1636, %vm1637
    %v1639 = vsel %vm1638, %v1631, %v1635
    %v1640 = vand.u32 2147483647, %v1585
    %vm1641 = vcmp.eq.f32.partialorder %v1640, 8.507059e+37
    %v1642 = vand.u32 %v1585, 2147483648
    %v1643 = vor.u32 1.1754944e-38, %v1642
    %v1644 = vsel %vm1641, %v1643, %v1639
    %v1645 = vmul.f32 1.0, %v1644
    %v1646 = vmul.f32 %v1600, 1.0614054
    %v1647 = vmul.f32 %v1615, 1.0614054
    %v1648 = vmul.f32 %v1630, 1.0614054
    %v1649 = vmul.f32 %v1645, 1.0614054
    %v1650 = vadd.f32 %v1646, -1.4531521
    %v1651 = vadd.f32 %v1647, -1.4531521
    %v1652 = vadd.f32 %v1648, -1.4531521
    %v1653 = vadd.f32 %v1649, -1.4531521
    %v1654 = vmul.f32 %v1650, %v1600
    %v1655 = vmul.f32 %v1651, %v1615
    %v1656 = vmul.f32 %v1652, %v1630
    %v1657 = vmul.f32 %v1653, %v1645
    %v1658 = vadd.f32 %v1654, 1.4214138
    %v1659 = vadd.f32 %v1655, 1.4214138
    %v1660 = vadd.f32 %v1656, 1.4214138
    %v1661 = vadd.f32 %v1657, 1.4214138
    %v1662 = vmul.f32 %v1658, %v1600
    %v1663 = vmul.f32 %v1659, %v1615
    %v1664 = vmul.f32 %v1660, %v1630
    %v1665 = vmul.f32 %v1661, %v1645
    %v1666 = vadd.f32 %v1662, -0.28449672
    %v1667 = vadd.f32 %v1663, -0.28449672
    %v1668 = vadd.f32 %v1664, -0.28449672
    %v1669 = vadd.f32 %v1665, -0.28449672
    %v1670 = vmul.f32 %v1666, %v1600
    %v1671 = vmul.f32 %v1667, %v1615
    %v1672 = vmul.f32 %v1668, %v1630
    %v1673 = vmul.f32 %v1669, %v1645
    %v1674 = vadd.f32 %v1670, 0.2548296
    %v1675 = vadd.f32 %v1671, 0.2548296
    %v1676 = vadd.f32 %v1672, 0.2548296
    %v1677 = vadd.f32 %v1673, 0.2548296
    %v1678 = vmul.f32 %v1674, %v1600
    %v1679 = vmul.f32 %v1675, %v1615
    %v1680 = vmul.f32 %v1676, %v1630
    %v1681 = vmul.f32 %v1677, %v1645
    %v1682 = vsub.f32 0.0, %v1574
    %v1683 = vsub.f32 0.0, %v1575
    %v1684 = vsub.f32 0.0, %v1576
    %v1685 = vsub.f32 0.0, %v1577
    %v1686 = vmul.f32 %v1682, %v1574
    %v1687 = vmul.f32 %v1683, %v1575
    %v1688 = vmul.f32 %v1684, %v1576
    %v1689 = vmul.f32 %v1685, %v1577
    %v1690 = vmul.f32 %v1686, 1.442695
    %v1691 = vpow.pop %v1690
    %v1692 = vmul.f32 %v1687, 1.442695
    %v1693 = vpow.pop %v1692
    %v1694 = vmul.f32 %v1688, 1.442695
    %v1695 = vpow.pop %v1694
    %v1696 = vmul.f32 %v1689, 1.442695
    %v1697 = vpow.pop %v1696
    %v1698 = vmul.f32 %v1678, %v1691
    %v1699 = vmul.f32 %v1679, %v1693
    %v1700 = vmul.f32 %v1680, %v1695
    %v1701 = vmul.f32 %v1681, %v1697
    %v1702 = vsub.f32 1.0, %v1698
    %v1703 = vsub.f32 1.0, %v1699
    %v1704 = vsub.f32 1.0, %v1700
    %v1705 = vsub.f32 1.0, %v1701
    %v1706 = vmul.f32 %v1570, %v1702
    %v1707 = vmul.f32 %v1571, %v1703
    %v1708 = vmul.f32 %v1572, %v1704
    %v1709 = vmul.f32 %v1573, %v1705
    %v1710 = vadd.f32 %v1706, 1.0
    %v1711 = vadd.f32 %v1707, 1.0
    %v1712 = vadd.f32 %v1708, 1.0
    %v1713 = vadd.f32 %v1709, 1.0
    %v1714 = vmul.f32 %v1558, %v1710
    %v1715 = vmul.f32 %v1559, %v1711
    %v1716 = vmul.f32 %v1560, %v1712
    %v1717 = vmul.f32 %v1561, %v1713
    %s1718 = scalar_lea.vmem %s17, 128
    %v1719 = vld [vmem:[%s1718] sm:$0xff]
    %v1720 = vld [vmem:[%s1718 + $0x8] sm:$0xff]
    %v1721 = vld [vmem:[%s1718 + $0x10] sm:$0xff]
    %v1722 = vld [vmem:[%s1718 + $0x18] sm:$0xff]
    %v1723 = vld [vmem:[%s1718 + $0x20] sm:$0xff]
    %v1724 = vld [vmem:[%s1718 + $0x28] sm:$0xff]
    %v1725 = vld [vmem:[%s1718 + $0x30] sm:$0xff]
    %v1726 = vld [vmem:[%s1718 + $0x38] sm:$0xff]
    %v1727 = vld [vmem:[%s1718 + $0x40] sm:$0xff]
    %v1728 = vld [vmem:[%s1718 + $0x48] sm:$0xff]
    %v1729 = vld [vmem:[%s1718 + $0x50] sm:$0xff]
    %v1730 = vld [vmem:[%s1718 + $0x58] sm:$0xff]
    %v1731 = vld [vmem:[%s1718 + $0x60] sm:$0xff]
    %v1732 = vld [vmem:[%s1718 + $0x68] sm:$0xff]
    %v1733 = vld [vmem:[%s1718 + $0x70] sm:$0xff]
    %v1734 = vld [vmem:[%s1718 + $0x78] sm:$0xff]
    %1735 = vmatpush.msra.mxu0 %v1734
    %1736 = vmatpush.msra.mxu0 %v1733
    %1737 = vmatpush.msra.mxu0 %v1732
    %1738 = vmatpush.msra.mxu0 %v1731
    %1739 = vmatpush.msra.mxu0 %v1730
    %1740 = vmatpush.msra.mxu0 %v1729
    %1741 = vmatpush.msra.mxu0 %v1728
    %1742 = vmatpush.msra.mxu0 %v1727
    %1743 = vmatpush.msra.mxu0 %v1726
    %1744 = vmatpush.msra.mxu0 %v1725
    %1745 = vmatpush.msra.mxu0 %v1724
    %1746 = vmatpush.msra.mxu0 %v1723
    %1747 = vmatpush.msra.mxu0 %v1722
    %1748 = vmatpush.msra.mxu0 %v1721
    %1749 = vmatpush.msra.mxu0 %v1720
    %1750 = vmatpush.msra.mxu0 %v1719
    %1751 = vmatmul.f32.gmra.mxu0 %v1714
    %v1752 = vpop.f32.mrf.mxu0
    %v1753 = vadd.f32 0.0, %v1752
    %1754 = vmatmul.f32.gmra.mxu0 %v1715
    %v1755 = vpop.f32.mrf.mxu0
    %v1756 = vadd.f32 0.0, %v1755
    %1757 = vmatmul.f32.gmra.mxu0 %v1716
    %v1758 = vpop.f32.mrf.mxu0
    %v1759 = vadd.f32 0.0, %v1758
    %1760 = vmatmul.f32.gmra.mxu0 %v1717
    %v1761 = vpop.f32.mrf.mxu0
    %v1762 = vadd.f32 0.0, %v1761
    %1763 = vdwg.mxu0
    %v1764 = vadd.f32 %v1397, %v1753
    %v1765 = vadd.f32 %v1398, %v1756
    %v1766 = vadd.f32 %v1399, %v1759
    %v1767 = vadd.f32 %v1400, %v1762
    %s1768 = scalar_lea.vmem %s18, 1
    %v1769 = vld [vmem:[%s1768] sm:$0x1]
    %v1771 = vperm.slane %v1769, 0
    %v1773 = vadd.f32 %v1764, %v1771
    %v1774 = vadd.f32 %v1765, %v1771
    %v1775 = vadd.f32 %v1766, %v1771
    %v1776 = vadd.f32 %v1767, %v1771
    %v1777 = vmul.u32 %v106, 16
    %v1778 = vadd.s32 %v1777, 8
    %vm1779 = vcmp.eq.s32.totalorder %v111, %v1778
    %v1780 = vsel %vm1779, 1, 0
    %v1781 = vcvt.s32.f32 %v1780
    %v1783 = vsel %vm86, %v1781, 0
    %1785 = vmatpush.msra.mxu0 0.0
    %1786 = vmatpush.msra.mxu0 0.0
    %1787 = vmatpush.msra.mxu0 0.0
    %1788 = vmatpush.msra.mxu0 0.0
    %1789 = vmatpush.msra.mxu0 0.0
    %1790 = vmatpush.msra.mxu0 0.0
    %1791 = vmatpush.msra.mxu0 0.0
    %1792 = vmatpush.msra.mxu0 0.0
    %1793 = vmatpush.msra.mxu0 0.0
    %1794 = vmatpush.msra.mxu0 0.0
    %1795 = vmatpush.msra.mxu0 0.0
    %1796 = vmatpush.msra.mxu0 0.0
    %1797 = vmatpush.msra.mxu0 %v1776
    %1798 = vmatpush.msra.mxu0 %v1775
    %1799 = vmatpush.msra.mxu0 %v1774
    %1800 = vmatpush.msra.mxu0 %v1773
    %1801 = vmatmul.f32.gmra.mxu0 %v1783
    %v1802 = vpop.f32.mrf.mxu0
    %v1803 = vadd.f32 0.0, %v1802
    %1804 = vdwg.mxu0
    %v1805 = vld [vmem:[%s19] sm:$0xff]
    %v1806 = vld [vmem:[%s19 + $0x8] sm:$0xff]
    %v1807 = vld [vmem:[%s19 + $0x10] sm:$0xff]
    %v1808 = vld [vmem:[%s19 + $0x18] sm:$0xff]
    %v1809 = vld [vmem:[%s1] sm:$0x3]
    %v1810 = vld [vmem:[%s20] sm:$0xf]
    %vm1811 = vcmask 31744
    %v1813 = vsel %vm1811, %v1809, 0
    %vm1815 = vcmask 1043456
    %v1817 = vsel %vm1815, %v1810, 0
    %1819 = vmatpush.msra.mxu0 0.0
    %1820 = vmatpush.msra.mxu0 0.0
    %1821 = vmatpush.msra.mxu0 0.0
    %1822 = vmatpush.msra.mxu0 0.0
    %1823 = vmatpush.msra.mxu0 0.0
    %1824 = vmatpush.msra.mxu0 0.0
    %1825 = vmatpush.msra.mxu0 0.0
    %1826 = vmatpush.msra.mxu0 0.0
    %1827 = vmatpush.msra.mxu0 0.0
    %1828 = vmatpush.msra.mxu0 0.0
    %1829 = vmatpush.msra.mxu0 0.0
    %1830 = vmatpush.msra.mxu0 0.0
    %1831 = vmatpush.msra.mxu0 0.0
    %1832 = vmatpush.msra.mxu0 0.0
    %1833 = vmatpush.msra.mxu0 0.0
    %1834 = vmatpush.msra.mxu0 %v1817
    %1835 = vmatmul.f32.gmra.mxu0 %v1813
    %v1836 = vpop.f32.mrf.mxu0
    %v1837 = vadd.f32 0.0, %v1836
    %1838 = vdwg.mxu0
    %v1840 = vsel %vm86, %v1803, 0
    %1842 = vmatpush.msra.mxu0 0.0
    %1843 = vmatpush.msra.mxu0 0.0
    %1844 = vmatpush.msra.mxu0 0.0
    %1845 = vmatpush.msra.mxu0 0.0
    %1846 = vmatpush.msra.mxu0 0.0
    %1847 = vmatpush.msra.mxu0 0.0
    %1848 = vmatpush.msra.mxu0 0.0
    %1849 = vmatpush.msra.mxu0 0.0
    %1850 = vmatpush.msra.mxu0 0.0
    %1851 = vmatpush.msra.mxu0 0.0
    %1852 = vmatpush.msra.mxu0 0.0
    %1853 = vmatpush.msra.mxu0 0.0
    %1854 = vmatpush.msra.mxu0 %v1808
    %1855 = vmatpush.msra.mxu0 %v1807
    %1856 = vmatpush.msra.mxu0 %v1806
    %1857 = vmatpush.msra.mxu0 %v1805
    %1858 = vmatmul.f32.gmra.mxu0 %v1840
    %v1859 = vpop.f32.mrf.mxu0
    %v1860 = vadd.f32 %v1837, %v1859
    %1861 = vdwg.mxu0
    %v1862 = vld [vmem:[%s21] sm:$0x1]
    %v1864 = vperm.slane %v1862, 0
    %v1866 = vadd.f32 %v1860, %v1864
    %vm1867 = vcmask 17408
    %1868 = vst.msk [vmem:[#allocation6] sm:$0x3] %vm1867, %v1866
    // Predicated region
    $region94: #{tpu_custom_call.1} parent=1 // pred_check
      _
    $region95: #{tpu_custom_call.1} parent=1 // pred_check_branch
      %1870 = sbr.rel (0) target = $region97
    $region96: #{tpu_custom_call.1} parent=1 // pred_region
      %1872 = vsyncadd [#allocation5], 0
      %s1874 = sshll.u32 [#allocation6], 4
      %s1875 = int_to_ptr.vmem [resolvable:$true] %s1874
      %s1876 = sshll.u32 %s22, 4
      %s1877 = int_to_ptr.hbm [resolvable:$true] %s1876
      %1879 = dma.vmem_to_hbm [thread:$0]  %s1875, 32, %s1877, [#allocation5]
    $region97: #{tpu_custom_call.1} parent=1 // pred_fallthru
      _
    // Predicated region
    $region98: #{tpu_custom_call.1} parent=1 // pred_check
      _
    $region99: #{tpu_custom_call.1} parent=1 // pred_check_branch
      %1881 = sbr.rel (0) target = $region101
    $region100: #{tpu_custom_call.1} parent=1 // pred_region
      %1883 = dma.done [#allocation5], 32
    $region101: #{tpu_custom_call.1} parent=1 // pred_fallthru
      _
    %1884 = vsyncpa [#allocation4], 1
    %1885 = vsyncpa [#allocation5], 1

</llo_original>
